<compile_context>
chip_gen: v5e
topology: v5e:2x2
jax: 0.10.0
libtpu: 0.0.40
codegen_flags: <defaults>
</compile_context>

<pallas_src>
import jax
import jax.numpy as jnp
from jax.experimental import pallas as pl
from jax.experimental.pallas import tpu as pltpu


def encoder_kernel(x_ref, w1_ref, b1_ref, w2_ref, b2_ref, wh_ref, bh_ref, out_ref):
    x = x_ref[...]                                               # [tb, D]
    # h1 = relu(fc1(x)) — f32 accumulation, f32 bias/ReLU.
    h1 = jnp.dot(x, w1_ref[...], preferred_element_type=jnp.float32) + b1_ref[...]
    h1 = jnp.maximum(h1, 0.0)
    # h2 = relu(fc2(h1))
    h2 = jnp.dot(h1.astype(w2_ref.dtype), w2_ref[...],
                 preferred_element_type=jnp.float32) + b2_ref[...]
    h2 = jnp.maximum(h2, 0.0)
    # Fused head: [mu | logvar] = h2 @ [Wmu | Wlv] + [bmu | blv]  -> [tb, 2L]
    out_ref[...] = (jnp.dot(h2.astype(wh_ref.dtype), wh_ref[...],
                            preferred_element_type=jnp.float32)
                    + bh_ref[...]).astype(out_ref.dtype)


def _default_batch_tile(B):
    # Prefer tb >= 128 (multiple of 8) AND >= 2 grid steps (v7x megacore).
    for tb in (512, 256, 128):
        if B % tb == 0 and B // tb >= 2:
            return tb
    for tb in (512, 256, 128):
        if B % tb == 0:
            return tb
    return B


def encoder_forward(x, params, *, batch_tile=None, compute_dtype=jnp.float32):
    B, D = x.shape
    H = params["w1"].shape[1]
    L = params["wmu"].shape[1]

    tb = _default_batch_tile(B) if batch_tile is None else batch_tile
    assert B % tb == 0 and tb % 8 == 0
    grid = (B // tb,)

    # Fused head: wmu || wlv -> [H, 2L], bmu || blv -> [1, 2L].
    wh = jnp.concatenate([params["wmu"], params["wlv"]], axis=1)
    bh = jnp.concatenate([params["bmu"], params["blv"]], axis=1)

    cd = jnp.dtype(compute_dtype)
    xc = x.astype(cd)
    w1 = params["w1"].astype(cd)
    w2 = params["w2"].astype(cd)
    wh = wh.astype(cd)
    b1 = params["b1"].astype(jnp.float32)
    b2 = params["b2"].astype(jnp.float32)
    bh = bh.astype(jnp.float32)

    # Scheduler hint.
    flops = 2 * B * (D * H + H * H + H * 2 * L)
    bytes_accessed = (B * D * cd.itemsize
                      + (D * H + H * H + H * 2 * L) * cd.itemsize
                      + (H + H + 2 * L) * 4
                      + B * 2 * L * 4)
    cost = pl.CostEstimate(flops=flops, transcendentals=0,
                           bytes_accessed=bytes_accessed)

    # Explicit VMEM budget: resident weights (ideally single-buffered) plus
    # double-buffered x / out tiles, with margin.  Clamp well below v7x's 64 MiB.
    weight_bytes = ((D * H + H * H + H * 2 * L) * cd.itemsize
                    + (H + H + 2 * L) * 4)
    stream_bytes = 2 * (tb * D * cd.itemsize + tb * 2 * L * 4)
    vmem_limit = int(min(max(2 * (weight_bytes + stream_bytes) + (4 << 20), 16 << 20),
                         48 << 20))

    def build(single_buffer_weights):
        if single_buffer_weights:
            # Constant-index weights/biases never need double buffering.
            def const_spec(shape):
                return pl.BlockSpec(shape, lambda i: (0, 0),
                                    pipeline_mode=pl.Buffered(1))
        else:
            def const_spec(shape):
                return pl.BlockSpec(shape, lambda i: (0, 0))

        return pl.pallas_call(
            encoder_kernel,
            out_shape=jax.ShapeDtypeStruct((B, 2 * L), jnp.float32),
            grid_spec=pltpu.PrefetchScalarGridSpec(
                num_scalar_prefetch=0,
                grid=grid,
                in_specs=[
                    pl.BlockSpec((tb, D), lambda i: (i, 0)),        # x tile (pipelined)
                    const_spec((D, H)), const_spec((1, H)),         # fc1
                    const_spec((H, H)), const_spec((1, H)),         # fc2 (in==input_dim==hidden_dim)
                    const_spec((H, 2 * L)), const_spec((1, 2 * L)), # fused mu|logvar head
                ],
                out_specs=pl.BlockSpec((tb, 2 * L), lambda i: (i, 0)),
            ),
            compiler_params=pltpu.CompilerParams(
                dimension_semantics=("parallel",),
                vmem_limit_bytes=vmem_limit),
            cost_estimate=cost,
        )

    args = (xc, w1, b1, w2, b2, wh, bh)
    try:
        out = build(True)(*args)
    except Exception:
        # pipeline_mode=pl.Buffered(1) not supported by this jax version:
        # retry with default (double-buffered) weight specs.
        out = build(False)(*args)

    mu, logvar = out[:, :L], out[:, L:]
    return mu, logvar


def init_params(key, input_dim, hidden_dim, latent_dim):
    """Deterministic init mimicking nn.Linear default (uniform +/- 1/sqrt(fan_in)).
    Weights are stored transposed: [in_features, out_features]."""
    def linear(k, fan_in, fan_out):
        kw, kb = jax.random.split(k)
        bound = 1.0 / jnp.sqrt(fan_in)
        w = jax.random.uniform(kw, (fan_in, fan_out), jnp.float32, -bound, bound)
        b = jax.random.uniform(kb, (1, fan_out), jnp.float32, -bound, bound)
        return w, b

    k1, k2, k3, k4 = jax.random.split(key, 4)
    w1, b1 = linear(k1, input_dim, hidden_dim)
    # fc2 is declared Linear(input_dim, hidden_dim) in the reference module.
    w2, b2 = linear(k2, input_dim, hidden_dim)
    wmu, bmu = linear(k3, hidden_dim, latent_dim)
    wlv, blv = linear(k4, hidden_dim, latent_dim)
    return dict(w1=w1, b1=b1, w2=w2, b2=b2, wmu=wmu, bmu=bmu, wlv=wlv, blv=blv)


def encoder_ref(x, p):
    """Pure-JAX reference matching the PyTorch forward (f32)."""
    h1 = jax.nn.relu(x @ p["w1"] + p["b1"])
    h2 = jax.nn.relu(h1 @ p["w2"] + p["b2"])
    mu = h2 @ p["wmu"] + p["bmu"]
    logvar = h2 @ p["wlv"] + p["blv"]
    return mu, logvar


if __name__ == "__main__":
    # User-profile feature vector -> latent distribution.  input_dim must equal
    # hidden_dim for the reference forward to be valid.  B=256 with tb=128
    # gives a 2-step "parallel" grid (feeds both v7x TensorCores).
    B, INPUT_DIM, HIDDEN_DIM, LATENT_DIM = 256, 32, 32, 16

    key = jax.random.PRNGKey(0)
    kx, kp = jax.random.split(key)
    x = jax.random.normal(kx, (B, INPUT_DIM), jnp.float32)
    params = init_params(kp, INPUT_DIM, HIDDEN_DIM, LATENT_DIM)

    mu_ref, logvar_ref = encoder_ref(x, params)

    # f32 operand path: tight check.
    mu, logvar = encoder_forward(x, params)
    jax.block_until_ready((mu, logvar))
    assert mu.shape == (B, LATENT_DIM) and logvar.shape == (B, LATENT_DIM)
    assert jnp.allclose(mu, mu_ref, atol=1e-5, rtol=1e-5)
    assert jnp.allclose(logvar, logvar_ref, atol=1e-5, rtol=1e-5)

    # bf16 operand path (v6e/v7x MXU sweet spot): loose check vs f32 reference.
    mu_bf, lv_bf = encoder_forward(x, params, compute_dtype=jnp.bfloat16)
    jax.block_until_ready((mu_bf, lv_bf))
    assert jnp.allclose(mu_bf, mu_ref, atol=5e-2, rtol=5e-2)
    assert jnp.allclose(lv_bf, logvar_ref, atol=5e-2, rtol=5e-2)

    print("KERNEL_OK")
</pallas_src>

<mosaic_0001>
module attributes {stable_mosaic.version = 11 : i64} {
  func.func @encoder_kernel(%arg0: i32, %arg1: memref<128x32xf32, #tpu.memory_space<vmem>>, %arg2: memref<32x32xf32, #tpu.memory_space<vmem>>, %arg3: memref<1x32xf32, #tpu.memory_space<vmem>>, %arg4: memref<32x32xf32, #tpu.memory_space<vmem>>, %arg5: memref<1x32xf32, #tpu.memory_space<vmem>>, %arg6: memref<32x32xf32, #tpu.memory_space<vmem>>, %arg7: memref<1x32xf32, #tpu.memory_space<vmem>>, %arg8: memref<128x32xf32, #tpu.memory_space<vmem>>) attributes {dimension_semantics = [#tpu.dimension_semantics<parallel>], iteration_bounds = array<i64: 2>, scalar_prefetch = 0 : i64, scratch_operands = 0 : i64, tpu.core_type = #tpu.core_type<tc>, window_params = [{transform_indices = @transform_0, window_bounds = array<i64: 128, 32>}, {pipeline_mode = #tpu.pipeline_mode<synchronous>, transform_indices = @transform_1, window_bounds = array<i64: 32, 32>}, {pipeline_mode = #tpu.pipeline_mode<synchronous>, transform_indices = @transform_2, window_bounds = array<i64: 1, 32>}, {pipeline_mode = #tpu.pipeline_mode<synchronous>, transform_indices = @transform_3, window_bounds = array<i64: 32, 32>}, {pipeline_mode = #tpu.pipeline_mode<synchronous>, transform_indices = @transform_4, window_bounds = array<i64: 1, 32>}, {pipeline_mode = #tpu.pipeline_mode<synchronous>, transform_indices = @transform_5, window_bounds = array<i64: 32, 32>}, {pipeline_mode = #tpu.pipeline_mode<synchronous>, transform_indices = @transform_6, window_bounds = array<i64: 1, 32>}, {transform_indices = @transform_7, window_bounds = array<i64: 128, 32>}]} {
    %c0 = arith.constant 0 : index
    %c0_0 = arith.constant 0 : index
    %0 = vector.load %arg1[%c0, %c0_0] : memref<128x32xf32, #tpu.memory_space<vmem>>, vector<128x32xf32>
    %c0_1 = arith.constant 0 : index
    %c0_2 = arith.constant 0 : index
    %1 = vector.load %arg2[%c0_1, %c0_2] : memref<32x32xf32, #tpu.memory_space<vmem>>, vector<32x32xf32>
    %cst = arith.constant dense<0.000000e+00> : vector<128x32xf32>
    %2 = tpu.matmul %0, %1, %cst {dimension_numbers = #tpu.dot_dimension_numbers<[1], [0], [0], [1], [0, 0, 1, 1], [], []>} : vector<128x32xf32>, vector<32x32xf32>, vector<128x32xf32> -> vector<128x32xf32>
    %c0_3 = arith.constant 0 : index
    %c0_4 = arith.constant 0 : index
    %3 = vector.load %arg3[%c0_3, %c0_4] : memref<1x32xf32, #tpu.memory_space<vmem>>, vector<1x32xf32>
    %4 = vector.broadcast %3 : vector<1x32xf32> to vector<128x32xf32>
    %5 = arith.addf %2, %4 : vector<128x32xf32>
    %cst_5 = arith.constant 0.000000e+00 : f32
    %6 = vector.broadcast %cst_5 : f32 to vector<128x32xf32>
    %7 = arith.maximumf %5, %6 : vector<128x32xf32>
    %c0_6 = arith.constant 0 : index
    %c0_7 = arith.constant 0 : index
    %8 = vector.load %arg4[%c0_6, %c0_7] : memref<32x32xf32, #tpu.memory_space<vmem>>, vector<32x32xf32>
    %cst_8 = arith.constant dense<0.000000e+00> : vector<128x32xf32>
    %9 = tpu.matmul %7, %8, %cst_8 {dimension_numbers = #tpu.dot_dimension_numbers<[1], [0], [0], [1], [0, 0, 1, 1], [], []>} : vector<128x32xf32>, vector<32x32xf32>, vector<128x32xf32> -> vector<128x32xf32>
    %c0_9 = arith.constant 0 : index
    %c0_10 = arith.constant 0 : index
    %10 = vector.load %arg5[%c0_9, %c0_10] : memref<1x32xf32, #tpu.memory_space<vmem>>, vector<1x32xf32>
    %11 = vector.broadcast %10 : vector<1x32xf32> to vector<128x32xf32>
    %12 = arith.addf %9, %11 : vector<128x32xf32>
    %cst_11 = arith.constant 0.000000e+00 : f32
    %13 = vector.broadcast %cst_11 : f32 to vector<128x32xf32>
    %14 = arith.maximumf %12, %13 : vector<128x32xf32>
    %c0_12 = arith.constant 0 : index
    %c0_13 = arith.constant 0 : index
    %15 = vector.load %arg6[%c0_12, %c0_13] : memref<32x32xf32, #tpu.memory_space<vmem>>, vector<32x32xf32>
    %cst_14 = arith.constant dense<0.000000e+00> : vector<128x32xf32>
    %16 = tpu.matmul %14, %15, %cst_14 {dimension_numbers = #tpu.dot_dimension_numbers<[1], [0], [0], [1], [0, 0, 1, 1], [], []>} : vector<128x32xf32>, vector<32x32xf32>, vector<128x32xf32> -> vector<128x32xf32>
    %c0_15 = arith.constant 0 : index
    %c0_16 = arith.constant 0 : index
    %17 = vector.load %arg7[%c0_15, %c0_16] : memref<1x32xf32, #tpu.memory_space<vmem>>, vector<1x32xf32>
    %18 = vector.broadcast %17 : vector<1x32xf32> to vector<128x32xf32>
    %19 = arith.addf %16, %18 : vector<128x32xf32>
    %c0_17 = arith.constant 0 : index
    %c0_18 = arith.constant 0 : index
    %20 = vector.load %arg8[%c0_17, %c0_18] : memref<128x32xf32, #tpu.memory_space<vmem>>, vector<128x32xf32>
    tpu.vector_store %arg8[%c0_17, %c0_18], %19 {strides = array<i32>} : memref<128x32xf32, #tpu.memory_space<vmem>>, vector<128x32xf32>,
    return
  }
  func.func @transform_0(%arg0: i32) -> (i32, i32) {
    %c0_i32 = arith.constant 0 : i32
    %c0_i32_0 = arith.constant 0 : i32
    return %arg0, %c0_i32 : i32, i32
  }
  func.func @transform_1(%arg0: i32) -> (i32, i32) {
    %c0_i32 = arith.constant 0 : i32
    %c0_i32_0 = arith.constant 0 : i32
    %c0_i32_1 = arith.constant 0 : i32
    return %c0_i32, %c0_i32_0 : i32, i32
  }
  func.func @transform_2(%arg0: i32) -> (i32, i32) {
    %c0_i32 = arith.constant 0 : i32
    %c0_i32_0 = arith.constant 0 : i32
    %c0_i32_1 = arith.constant 0 : i32
    return %c0_i32, %c0_i32_0 : i32, i32
  }
  func.func @transform_3(%arg0: i32) -> (i32, i32) {
    %c0_i32 = arith.constant 0 : i32
    %c0_i32_0 = arith.constant 0 : i32
    %c0_i32_1 = arith.constant 0 : i32
    return %c0_i32, %c0_i32_0 : i32, i32
  }
  func.func @transform_4(%arg0: i32) -> (i32, i32) {
    %c0_i32 = arith.constant 0 : i32
    %c0_i32_0 = arith.constant 0 : i32
    %c0_i32_1 = arith.constant 0 : i32
    return %c0_i32, %c0_i32_0 : i32, i32
  }
  func.func @transform_5(%arg0: i32) -> (i32, i32) {
    %c0_i32 = arith.constant 0 : i32
    %c0_i32_0 = arith.constant 0 : i32
    %c0_i32_1 = arith.constant 0 : i32
    return %c0_i32, %c0_i32_0 : i32, i32
  }
  func.func @transform_6(%arg0: i32) -> (i32, i32) {
    %c0_i32 = arith.constant 0 : i32
    %c0_i32_0 = arith.constant 0 : i32
    %c0_i32_1 = arith.constant 0 : i32
    return %c0_i32, %c0_i32_0 : i32, i32
  }
  func.func @transform_7(%arg0: i32) -> (i32, i32) {
    %c0_i32 = arith.constant 0 : i32
    %c0_i32_0 = arith.constant 0 : i32
    return %arg0, %c0_i32 : i32, i32
  }
}

module attributes {stable_mosaic.version = 11 : i64} {
  func.func @encoder_kernel(%arg0: i32, %arg1: memref<128x32xf32, #tpu.memory_space<vmem>>, %arg2: memref<32x32xf32, #tpu.memory_space<vmem>>, %arg3: memref<1x32xf32, #tpu.memory_space<vmem>>, %arg4: memref<32x32xf32, #tpu.memory_space<vmem>>, %arg5: memref<1x32xf32, #tpu.memory_space<vmem>>, %arg6: memref<32x32xf32, #tpu.memory_space<vmem>>, %arg7: memref<1x32xf32, #tpu.memory_space<vmem>>, %arg8: memref<128x32xf32, #tpu.memory_space<vmem>>) attributes {dimension_semantics = [#tpu.dimension_semantics<parallel>], iteration_bounds = array<i64: 2>, scalar_prefetch = 0 : i64, scratch_operands = 0 : i64, tpu.core_type = #tpu.core_type<tc>, window_params = [{transform_indices = @transform_0, window_bounds = array<i64: 128, 32>}, {pipeline_mode = #tpu.pipeline_mode<synchronous>, transform_indices = @transform_1, window_bounds = array<i64: 32, 32>}, {pipeline_mode = #tpu.pipeline_mode<synchronous>, transform_indices = @transform_2, window_bounds = array<i64: 1, 32>}, {pipeline_mode = #tpu.pipeline_mode<synchronous>, transform_indices = @transform_3, window_bounds = array<i64: 32, 32>}, {pipeline_mode = #tpu.pipeline_mode<synchronous>, transform_indices = @transform_4, window_bounds = array<i64: 1, 32>}, {pipeline_mode = #tpu.pipeline_mode<synchronous>, transform_indices = @transform_5, window_bounds = array<i64: 32, 32>}, {pipeline_mode = #tpu.pipeline_mode<synchronous>, transform_indices = @transform_6, window_bounds = array<i64: 1, 32>}, {transform_indices = @transform_7, window_bounds = array<i64: 128, 32>}]} {
    %c0 = arith.constant 0 : index
    %c0_0 = arith.constant 0 : index
    %0 = vector.load %arg1[%c0, %c0_0] : memref<128x32xf32, #tpu.memory_space<vmem>>, vector<128x32xf32>
    %c0_1 = arith.constant 0 : index
    %c0_2 = arith.constant 0 : index
    %1 = vector.load %arg2[%c0_1, %c0_2] : memref<32x32xf32, #tpu.memory_space<vmem>>, vector<32x32xf32>
    %cst = arith.constant dense<0.000000e+00> : vector<128x32xf32>
    %2 = tpu.matmul %0, %1, %cst {dimension_numbers = #tpu.dot_dimension_numbers<[1], [0], [0], [1], [0, 0, 1, 1], [], []>} : vector<128x32xf32>, vector<32x32xf32>, vector<128x32xf32> -> vector<128x32xf32>
    %c0_3 = arith.constant 0 : index
    %c0_4 = arith.constant 0 : index
    %3 = vector.load %arg3[%c0_3, %c0_4] : memref<1x32xf32, #tpu.memory_space<vmem>>, vector<1x32xf32>
    %4 = vector.broadcast %3 : vector<1x32xf32> to vector<128x32xf32>
    %5 = arith.addf %2, %4 : vector<128x32xf32>
    %cst_5 = arith.constant 0.000000e+00 : f32
    %6 = vector.broadcast %cst_5 : f32 to vector<128x32xf32>
    %7 = arith.maximumf %5, %6 : vector<128x32xf32>
    %c0_6 = arith.constant 0 : index
    %c0_7 = arith.constant 0 : index
    %8 = vector.load %arg4[%c0_6, %c0_7] : memref<32x32xf32, #tpu.memory_space<vmem>>, vector<32x32xf32>
    %cst_8 = arith.constant dense<0.000000e+00> : vector<128x32xf32>
    %9 = tpu.matmul %7, %8, %cst_8 {dimension_numbers = #tpu.dot_dimension_numbers<[1], [0], [0], [1], [0, 0, 1, 1], [], []>} : vector<128x32xf32>, vector<32x32xf32>, vector<128x32xf32> -> vector<128x32xf32>
    %c0_9 = arith.constant 0 : index
    %c0_10 = arith.constant 0 : index
    %10 = vector.load %arg5[%c0_9, %c0_10] : memref<1x32xf32, #tpu.memory_space<vmem>>, vector<1x32xf32>
    %11 = vector.broadcast %10 : vector<1x32xf32> to vector<128x32xf32>
    %12 = arith.addf %9, %11 : vector<128x32xf32>
    %cst_11 = arith.constant 0.000000e+00 : f32
    %13 = vector.broadcast %cst_11 : f32 to vector<128x32xf32>
    %14 = arith.maximumf %12, %13 : vector<128x32xf32>
    %c0_12 = arith.constant 0 : index
    %c0_13 = arith.constant 0 : index
    %15 = vector.load %arg6[%c0_12, %c0_13] : memref<32x32xf32, #tpu.memory_space<vmem>>, vector<32x32xf32>
    %cst_14 = arith.constant dense<0.000000e+00> : vector<128x32xf32>
    %16 = tpu.matmul %14, %15, %cst_14 {dimension_numbers = #tpu.dot_dimension_numbers<[1], [0], [0], [1], [0, 0, 1, 1], [], []>} : vector<128x32xf32>, vector<32x32xf32>, vector<128x32xf32> -> vector<128x32xf32>
    %c0_15 = arith.constant 0 : index
    %c0_16 = arith.constant 0 : index
    %17 = vector.load %arg7[%c0_15, %c0_16] : memref<1x32xf32, #tpu.memory_space<vmem>>, vector<1x32xf32>
    %18 = vector.broadcast %17 : vector<1x32xf32> to vector<128x32xf32>
    %19 = arith.addf %16, %18 : vector<128x32xf32>
    %c0_17 = arith.constant 0 : index
    %c0_18 = arith.constant 0 : index
    %20 = vector.load %arg8[%c0_17, %c0_18] : memref<128x32xf32, #tpu.memory_space<vmem>>, vector<128x32xf32>
    tpu.vector_store %arg8[%c0_17, %c0_18], %19 {strides = array<i32>} : memref<128x32xf32, #tpu.memory_space<vmem>>, vector<128x32xf32>,
    return
  }
  func.func @transform_0(%arg0: i32) -> (i32, i32) {
    %c0_i32 = arith.constant 0 : i32
    %c0_i32_0 = arith.constant 0 : i32
    return %arg0, %c0_i32 : i32, i32
  }
  func.func @transform_1(%arg0: i32) -> (i32, i32) {
    %c0_i32 = arith.constant 0 : i32
    %c0_i32_0 = arith.constant 0 : i32
    %c0_i32_1 = arith.constant 0 : i32
    return %c0_i32, %c0_i32_0 : i32, i32
  }
  func.func @transform_2(%arg0: i32) -> (i32, i32) {
    %c0_i32 = arith.constant 0 : i32
    %c0_i32_0 = arith.constant 0 : i32
    %c0_i32_1 = arith.constant 0 : i32
    return %c0_i32, %c0_i32_0 : i32, i32
  }
  func.func @transform_3(%arg0: i32) -> (i32, i32) {
    %c0_i32 = arith.constant 0 : i32
    %c0_i32_0 = arith.constant 0 : i32
    %c0_i32_1 = arith.constant 0 : i32
    return %c0_i32, %c0_i32_0 : i32, i32
  }
  func.func @transform_4(%arg0: i32) -> (i32, i32) {
    %c0_i32 = arith.constant 0 : i32
    %c0_i32_0 = arith.constant 0 : i32
    %c0_i32_1 = arith.constant 0 : i32
    return %c0_i32, %c0_i32_0 : i32, i32
  }
  func.func @transform_5(%arg0: i32) -> (i32, i32) {
    %c0_i32 = arith.constant 0 : i32
    %c0_i32_0 = arith.constant 0 : i32
    %c0_i32_1 = arith.constant 0 : i32
    return %c0_i32, %c0_i32_0 : i32, i32
  }
  func.func @transform_6(%arg0: i32) -> (i32, i32) {
    %c0_i32 = arith.constant 0 : i32
    %c0_i32_0 = arith.constant 0 : i32
    %c0_i32_1 = arith.constant 0 : i32
    return %c0_i32, %c0_i32_0 : i32, i32
  }
  func.func @transform_7(%arg0: i32) -> (i32, i32) {
    %c0_i32 = arith.constant 0 : i32
    %c0_i32_0 = arith.constant 0 : i32
    return %arg0, %c0_i32 : i32, i32
  }
}

</mosaic_0001>

<llo_original>
// kernel: tpu_custom_call.1
$region0: #{tpu_custom_call.1}
  #allocation0 [shape = 'u32[]', space=smem, size = 0x4, offset = 0x4, fixed_abs, tag = 'smem constant byte address 0x4 - core index']
  #allocation1 [shape = 'u32[72,128]{1,0:T(1,128)}', space=vmem, size = 0x9000, scoped, tag = 'internal scratch']
  %s0 = inlined_call_operand.vmem [shape: f32[256,32], index: 0, kind: input, shape index: {}]
  %s1 = inlined_call_operand.vmem [shape: f32[32,32], index: 1, kind: input, shape index: {}]
  %s2 = inlined_call_operand.vmem [shape: f32[1,32], index: 2, kind: input, shape index: {}]
  %s3 = inlined_call_operand.vmem [shape: f32[32,32], index: 3, kind: input, shape index: {}]
  %s4 = inlined_call_operand.vmem [shape: f32[1,32], index: 4, kind: input, shape index: {}]
  %s5 = inlined_call_operand.vmem [shape: f32[32,32], index: 5, kind: input, shape index: {}]
  %s6 = inlined_call_operand.vmem [shape: f32[1,32], index: 6, kind: input, shape index: {}]
  %s7 = inlined_call_operand.vmem [shape: f32[256,32], index: 7, kind: output, shape index: {}]
  %s8 = sld [smem:[#allocation0]]
  $region61: #{tpu_custom_call.1} parent=0
    _
  %s10 = ssub.s32 1, %s8
  %s11 = scalar_select 0, %s10, %s8
  loop: start=0, step=1, limit=4
  $region2: #{tpu_custom_call.1} parent=0 // loop_pre_header
    _
  $region3: #{tpu_custom_call.1} parent=0 // loop_header
    %s13 = sphi 0, %s17
    %p14 = scmp.ge.s32.totalorder %s13, 4
    %s23 = sphi 0, %s25
    %s26 = sphi 0, %s23
    %s27 = sphi 0, %s26
    %s43 = sphi 0, %s27
    %s47 = sphi 0, %s47
    %s49 = sphi 0, %s47
    %s50 = sphi 0, %s49
    %s64 = sphi 0, %s50
    %s68 = sphi 0, %s68
    %s70 = sphi 0, %s68
    %s71 = sphi 0, %s70
    %s85 = sphi 0, %s71
    %s89 = sphi 0, %s89
    %s91 = sphi 0, %s89
    %s92 = sphi 0, %s91
    %s106 = sphi 0, %s92
    %s110 = sphi 0, %s110
    %s112 = sphi 0, %s110
    %s113 = sphi 0, %s112
    %s127 = sphi 0, %s113
    %s131 = sphi 0, %s131
    %s133 = sphi 0, %s131
    %s134 = sphi 0, %s133
    %s148 = sphi 0, %s134
    %s152 = sphi 0, %s152
    %s154 = sphi 0, %s152
    %s155 = sphi 0, %s154
    %s169 = sphi 0, %s155
    %s175 = sphi 0, %s177
    %s178 = sphi 0, %s175
    %s179 = sphi 0, %s178
    %s195 = sphi 0, %s179
  $region4: #{tpu_custom_call.1} parent=0 // loop_header_branch
    %16 = sbr.rel (%p14) target = $region8
  $region5: #{tpu_custom_call.1} parent=0 // loop_body
    %s18 = ssub.s32 %s13, 1
    %s19 = ssub.s32 %s13, 2
    %s20 = sadd.s32 %s13, 1
    %s21 = ssub.s32 %s13, %s20
    %p22 = scmp.eq.s32.totalorder %s21, 0
    %s24 = sadd.s32 %s23, 1
    %s25 = scalar_select %p22, %s23, %s24
    %p28 = pneg %p22
    %p29 = scmp.eq.s32.totalorder %s13, 1
    %p30 = por %p28, %p29
    %p31 = scmp.ne.s32.totalorder %s23, %s26
    %p32 = scmp.eq.s32.totalorder %s13, 0
    %p33 = por %p31, %p32
    %p34 = scmp.ne.s32.totalorder %s23, %s26
    %p35 = scmp.eq.s32.totalorder %s18, 1
    %p36 = por %p34, %p35
    %p37 = scmp.ne.s32.totalorder %s26, %s27
    %p38 = scmp.eq.s32.totalorder %s18, 0
    %p39 = por %p37, %p38
    %p40 = scmp.ne.s32.totalorder %s26, %s27
    %p41 = scmp.eq.s32.totalorder %s19, 1
    %p42 = por %p40, %p41
    %p44 = scmp.ne.s32.totalorder %s27, %s43
    %p45 = scmp.eq.s32.totalorder %s19, 0
    %p46 = por %p44, %p45
    %s48 = sadd.s32 %s47, 1
    %p51 = scmp.eq.s32.totalorder %s13, 1
    %p52 = scmp.ne.s32.totalorder %s47, %s49
    %p53 = scmp.eq.s32.totalorder %s13, 0
    %p54 = por %p52, %p53
    %p55 = scmp.ne.s32.totalorder %s47, %s49
    %p56 = scmp.eq.s32.totalorder %s18, 1
    %p57 = por %p55, %p56
    %p58 = scmp.ne.s32.totalorder %s49, %s50
    %p59 = scmp.eq.s32.totalorder %s18, 0
    %p60 = por %p58, %p59
    %p61 = scmp.ne.s32.totalorder %s49, %s50
    %p62 = scmp.eq.s32.totalorder %s19, 1
    %p63 = por %p61, %p62
    %p65 = scmp.ne.s32.totalorder %s50, %s64
    %p66 = scmp.eq.s32.totalorder %s19, 0
    %p67 = por %p65, %p66
    %s69 = sadd.s32 %s68, 1
    %p72 = scmp.eq.s32.totalorder %s13, 1
    %p73 = scmp.ne.s32.totalorder %s68, %s70
    %p74 = scmp.eq.s32.totalorder %s13, 0
    %p75 = por %p73, %p74
    %p76 = scmp.ne.s32.totalorder %s68, %s70
    %p77 = scmp.eq.s32.totalorder %s18, 1
    %p78 = por %p76, %p77
    %p79 = scmp.ne.s32.totalorder %s70, %s71
    %p80 = scmp.eq.s32.totalorder %s18, 0
    %p81 = por %p79, %p80
    %p82 = scmp.ne.s32.totalorder %s70, %s71
    %p83 = scmp.eq.s32.totalorder %s19, 1
    %p84 = por %p82, %p83
    %p86 = scmp.ne.s32.totalorder %s71, %s85
    %p87 = scmp.eq.s32.totalorder %s19, 0
    %p88 = por %p86, %p87
    %s90 = sadd.s32 %s89, 1
    %p93 = scmp.eq.s32.totalorder %s13, 1
    %p94 = scmp.ne.s32.totalorder %s89, %s91
    %p95 = scmp.eq.s32.totalorder %s13, 0
    %p96 = por %p94, %p95
    %p97 = scmp.ne.s32.totalorder %s89, %s91
    %p98 = scmp.eq.s32.totalorder %s18, 1
    %p99 = por %p97, %p98
    %p100 = scmp.ne.s32.totalorder %s91, %s92
    %p101 = scmp.eq.s32.totalorder %s18, 0
    %p102 = por %p100, %p101
    %p103 = scmp.ne.s32.totalorder %s91, %s92
    %p104 = scmp.eq.s32.totalorder %s19, 1
    %p105 = por %p103, %p104
    %p107 = scmp.ne.s32.totalorder %s92, %s106
    %p108 = scmp.eq.s32.totalorder %s19, 0
    %p109 = por %p107, %p108
    %s111 = sadd.s32 %s110, 1
    %p114 = scmp.eq.s32.totalorder %s13, 1
    %p115 = scmp.ne.s32.totalorder %s110, %s112
    %p116 = scmp.eq.s32.totalorder %s13, 0
    %p117 = por %p115, %p116
    %p118 = scmp.ne.s32.totalorder %s110, %s112
    %p119 = scmp.eq.s32.totalorder %s18, 1
    %p120 = por %p118, %p119
    %p121 = scmp.ne.s32.totalorder %s112, %s113
    %p122 = scmp.eq.s32.totalorder %s18, 0
    %p123 = por %p121, %p122
    %p124 = scmp.ne.s32.totalorder %s112, %s113
    %p125 = scmp.eq.s32.totalorder %s19, 1
    %p126 = por %p124, %p125
    %p128 = scmp.ne.s32.totalorder %s113, %s127
    %p129 = scmp.eq.s32.totalorder %s19, 0
    %p130 = por %p128, %p129
    %s132 = sadd.s32 %s131, 1
    %p135 = scmp.eq.s32.totalorder %s13, 1
    %p136 = scmp.ne.s32.totalorder %s131, %s133
    %p137 = scmp.eq.s32.totalorder %s13, 0
    %p138 = por %p136, %p137
    %p139 = scmp.ne.s32.totalorder %s131, %s133
    %p140 = scmp.eq.s32.totalorder %s18, 1
    %p141 = por %p139, %p140
    %p142 = scmp.ne.s32.totalorder %s133, %s134
    %p143 = scmp.eq.s32.totalorder %s18, 0
    %p144 = por %p142, %p143
    %p145 = scmp.ne.s32.totalorder %s133, %s134
    %p146 = scmp.eq.s32.totalorder %s19, 1
    %p147 = por %p145, %p146
    %p149 = scmp.ne.s32.totalorder %s134, %s148
    %p150 = scmp.eq.s32.totalorder %s19, 0
    %p151 = por %p149, %p150
    %s153 = sadd.s32 %s152, 1
    %p156 = scmp.eq.s32.totalorder %s13, 1
    %p157 = scmp.ne.s32.totalorder %s152, %s154
    %p158 = scmp.eq.s32.totalorder %s13, 0
    %p159 = por %p157, %p158
    %p160 = scmp.ne.s32.totalorder %s152, %s154
    %p161 = scmp.eq.s32.totalorder %s18, 1
    %p162 = por %p160, %p161
    %p163 = scmp.ne.s32.totalorder %s154, %s155
    %p164 = scmp.eq.s32.totalorder %s18, 0
    %p165 = por %p163, %p164
    %p166 = scmp.ne.s32.totalorder %s154, %s155
    %p167 = scmp.eq.s32.totalorder %s19, 1
    %p168 = por %p166, %p167
    %p170 = scmp.ne.s32.totalorder %s155, %s169
    %p171 = scmp.eq.s32.totalorder %s19, 0
    %p172 = por %p170, %p171
    %s173 = ssub.s32 %s13, %s20
    %p174 = scmp.eq.s32.totalorder %s173, 0
    %s176 = sadd.s32 %s175, 1
    %s177 = scalar_select %p174, %s175, %s176
    %p180 = pneg %p174
    %p181 = scmp.eq.s32.totalorder %s13, 1
    %p182 = por %p180, %p181
    %p183 = scmp.ne.s32.totalorder %s175, %s178
    %p184 = scmp.eq.s32.totalorder %s13, 0
    %p185 = por %p183, %p184
    %p186 = scmp.ne.s32.totalorder %s175, %s178
    %p187 = scmp.eq.s32.totalorder %s18, 1
    %p188 = por %p186, %p187
    %p189 = scmp.ne.s32.totalorder %s178, %s179
    %p190 = scmp.eq.s32.totalorder %s18, 0
    %p191 = por %p189, %p190
    %p192 = scmp.ne.s32.totalorder %s178, %s179
    %p193 = scmp.eq.s32.totalorder %s19, 1
    %p194 = por %p192, %p193
    %p196 = scmp.ne.s32.totalorder %s179, %s195
    %p197 = scmp.eq.s32.totalorder %s19, 0
    %p198 = por %p196, %p197
    %p199 = scmp.le.s32.totalorder 1, %s13
    %p200 = scmp.lt.s32.totalorder %s13, 3
    %p201 = pnand %p199, %p200
    %p202 = pneg %p201
    // Predicated region
    $region9: #{tpu_custom_call.1} parent=5 // pred_check
      _
    $region10: #{tpu_custom_call.1} parent=5 // pred_check_branch
      %204 = sbr.rel (%p201) target = $region12
    $region11: #{tpu_custom_call.1} parent=5 // pred_region
      %s205 = ssub.s32 %s13, 1
      // Predicated region
      $region13: #{tpu_custom_call.1} parent=11 // pred_check
        %p206 = pneg %p60
      $region14: #{tpu_custom_call.1} parent=11 // pred_check_branch
        %208 = sbr.rel (%p206) target = $region16
      $region15: #{tpu_custom_call.1} parent=11 // pred_region
        _
      $region16: #{tpu_custom_call.1} parent=11 // pred_fallthru
        _
      // Predicated region
      $region17: #{tpu_custom_call.1} parent=11 // pred_check
        %p209 = pneg %p81
      $region18: #{tpu_custom_call.1} parent=11 // pred_check_branch
        %211 = sbr.rel (%p209) target = $region20
      $region19: #{tpu_custom_call.1} parent=11 // pred_region
        _
      $region20: #{tpu_custom_call.1} parent=11 // pred_fallthru
        _
      // Predicated region
      $region21: #{tpu_custom_call.1} parent=11 // pred_check
        %p212 = pneg %p102
      $region22: #{tpu_custom_call.1} parent=11 // pred_check_branch
        %214 = sbr.rel (%p212) target = $region24
      $region23: #{tpu_custom_call.1} parent=11 // pred_region
        _
      $region24: #{tpu_custom_call.1} parent=11 // pred_fallthru
        _
      // Predicated region
      $region25: #{tpu_custom_call.1} parent=11 // pred_check
        %p215 = pneg %p123
      $region26: #{tpu_custom_call.1} parent=11 // pred_check_branch
        %217 = sbr.rel (%p215) target = $region28
      $region27: #{tpu_custom_call.1} parent=11 // pred_region
        _
      $region28: #{tpu_custom_call.1} parent=11 // pred_fallthru
        _
      // Predicated region
      $region29: #{tpu_custom_call.1} parent=11 // pred_check
        %p218 = pneg %p144
      $region30: #{tpu_custom_call.1} parent=11 // pred_check_branch
        %220 = sbr.rel (%p218) target = $region32
      $region31: #{tpu_custom_call.1} parent=11 // pred_region
        _
      $region32: #{tpu_custom_call.1} parent=11 // pred_fallthru
        _
      // Predicated region
      $region33: #{tpu_custom_call.1} parent=11 // pred_check
        %p221 = pneg %p165
      $region34: #{tpu_custom_call.1} parent=11 // pred_check_branch
        %223 = sbr.rel (%p221) target = $region36
      $region35: #{tpu_custom_call.1} parent=11 // pred_region
        _
      $region36: #{tpu_custom_call.1} parent=11 // pred_fallthru
        _
    $region12: #{tpu_custom_call.1} parent=5 // pred_fallthru
      _
    %p224 = scmp.lt.s32.totalorder %s13, 2
    // Predicated region
    $region37: #{tpu_custom_call.1} parent=5 // pred_check
      %p225 = pneg %p224
    $region38: #{tpu_custom_call.1} parent=5 // pred_check_branch
      %227 = sbr.rel (%p225) target = $region40
    $region39: #{tpu_custom_call.1} parent=5 // pred_region
      // Predicated region
      $region41: #{tpu_custom_call.1} parent=39 // pred_check
        %p228 = pneg %p33
      $region42: #{tpu_custom_call.1} parent=39 // pred_check_branch
        %230 = sbr.rel (%p228) target = $region44
      $region43: #{tpu_custom_call.1} parent=39 // pred_region
        %s231 = smul.u32 16, %s13
        %p232 = scmp.lt.s32.totalorder %s231, 31
        %s233 = scalar_select %p232, %s231, 31
        %s234 = smul.addr %s233, 8
        %s235 = scalar_lea.vmem %s0, %s234
        %s236 = smul.u32 16, %s13
      $region44: #{tpu_custom_call.1} parent=39 // pred_fallthru
        _
    $region40: #{tpu_custom_call.1} parent=5 // pred_fallthru
      _
    %p237 = scmp.le.s32.totalorder 1, %s13
    %p238 = scmp.lt.s32.totalorder %s13, 3
    %p239 = pnand %p237, %p238
    %p240 = pneg %p239
    // Predicated region
    $region45: #{tpu_custom_call.1} parent=5 // pred_check
      _
    $region46: #{tpu_custom_call.1} parent=5 // pred_check_branch
      %242 = sbr.rel (%p239) target = $region48
    $region47: #{tpu_custom_call.1} parent=5 // pred_region
      %s243 = ssub.s32 %s13, 1
      %s244 = smul.u32 16, %s18
      %p245 = scmp.lt.s32.totalorder %s244, 31
      %s246 = scalar_select %p245, %s244, 31
      %s247 = smul.addr %s246, 8
      %s248 = scalar_lea.vmem %s0, %s247
      %p249 = pneg %p39
      %p250 = pneg %p36
      %p251 = pneg %p60
      %p252 = pneg %p57
      %p253 = pneg %p81
      %p254 = pneg %p78
      %p255 = pneg %p102
      %p256 = pneg %p99
      %p257 = pneg %p123
      %p258 = pneg %p120
      %p259 = pneg %p144
      %p260 = pneg %p141
      %p261 = pneg %p165
      %p262 = pneg %p162
      %p263 = pneg %p191
      %p264 = pneg %p188
      %s265 = smul.u32 16, %s18
      %p266 = scmp.lt.s32.totalorder %s265, 31
      %s267 = scalar_select %p266, %s265, 31
      %s268 = smul.addr %s267, 8
      %s269 = scalar_lea.vmem %s7, %s268
      %s270 = smul.u32 16, %s18
      %p271 = scmp.lt.s32.totalorder %s270, 31
      %s272 = scalar_select %p271, %s270, 31
      %s273 = smul.addr %s272, 8
      %s274 = scalar_lea.vmem %s0, %s273
      %s275 = smul.u32 16, %s18
      %s276 = smul.u32 16, %s18
      %p277 = scmp.lt.s32.totalorder %s276, 31
      %s278 = scalar_select %p277, %s276, 31
      %s279 = smul.addr %s278, 8
      %s280 = scalar_lea.vmem %s7, %s279
      %s281 = smul.u32 16, %s18
      %v282 = vld [vmem:[%s274] sm:$0xff]
      %v283 = vld [vmem:[%s274 + $0x8] sm:$0xff]
      %v284 = vld [vmem:[%s274 + $0x10] sm:$0xff]
      %v285 = vld [vmem:[%s274 + $0x18] sm:$0xff]
      %v286 = vld [vmem:[%s274 + $0x20] sm:$0xff]
      %v287 = vld [vmem:[%s274 + $0x28] sm:$0xff]
      %v288 = vld [vmem:[%s274 + $0x30] sm:$0xff]
      %v289 = vld [vmem:[%s274 + $0x38] sm:$0xff]
      %v290 = vld [vmem:[%s274 + $0x40] sm:$0xff]
      %v291 = vld [vmem:[%s274 + $0x48] sm:$0xff]
      %v292 = vld [vmem:[%s274 + $0x50] sm:$0xff]
      %v293 = vld [vmem:[%s274 + $0x58] sm:$0xff]
      %v294 = vld [vmem:[%s274 + $0x60] sm:$0xff]
      %v295 = vld [vmem:[%s274 + $0x68] sm:$0xff]
      %v296 = vld [vmem:[%s274 + $0x70] sm:$0xff]
      %v297 = vld [vmem:[%s274 + $0x78] sm:$0xff]
      %v298 = vld [vmem:[%s1] sm:$0xff]
      %v299 = vld [vmem:[%s1 + $0x8] sm:$0xff]
      %v300 = vld [vmem:[%s1 + $0x10] sm:$0xff]
      %v301 = vld [vmem:[%s1 + $0x18] sm:$0xff]
      %v302 = vld [vmem:[%s2] sm:$0x1]
      %v304 = vperm.slane %v302, 0
      %vm306 = vcmask 261120
      %v308 = vsel %vm306, %v282, 0
      %v311 = vsel %vm306, %v283, 0
      %v314 = vsel %vm306, %v284, 0
      %v317 = vsel %vm306, %v285, 0
      %v320 = vsel %vm306, %v286, 0
      %v323 = vsel %vm306, %v287, 0
      %v326 = vsel %vm306, %v288, 0
      %v329 = vsel %vm306, %v289, 0
      %v332 = vsel %vm306, %v290, 0
      %v335 = vsel %vm306, %v291, 0
      %v338 = vsel %vm306, %v292, 0
      %v341 = vsel %vm306, %v293, 0
      %v344 = vsel %vm306, %v294, 0
      %v347 = vsel %vm306, %v295, 0
      %v350 = vsel %vm306, %v296, 0
      %v353 = vsel %vm306, %v297, 0
      %355 = vmatpush.msra.mxu0 0.0
      %356 = vmatpush.msra.mxu0 0.0
      %357 = vmatpush.msra.mxu0 0.0
      %358 = vmatpush.msra.mxu0 0.0
      %359 = vmatpush.msra.mxu0 0.0
      %360 = vmatpush.msra.mxu0 0.0
      %361 = vmatpush.msra.mxu0 0.0
      %362 = vmatpush.msra.mxu0 0.0
      %363 = vmatpush.msra.mxu0 0.0
      %364 = vmatpush.msra.mxu0 0.0
      %365 = vmatpush.msra.mxu0 0.0
      %366 = vmatpush.msra.mxu0 0.0
      %367 = vmatpush.msra.mxu0 %v301
      %368 = vmatpush.msra.mxu0 %v300
      %369 = vmatpush.msra.mxu0 %v299
      %370 = vmatpush.msra.mxu0 %v298
      %371 = vmatmul.f32.gmra.mxu0 %v308
      %v372 = vpop.f32.mrf.mxu0
      %v373 = vadd.f32 %v304, %v372
      %374 = vmatmul.f32.gmra.mxu0 %v311
      %v375 = vpop.f32.mrf.mxu0
      %v376 = vadd.f32 %v304, %v375
      %377 = vmatmul.f32.gmra.mxu0 %v314
      %v378 = vpop.f32.mrf.mxu0
      %v379 = vadd.f32 %v304, %v378
      %380 = vmatmul.f32.gmra.mxu0 %v317
      %v381 = vpop.f32.mrf.mxu0
      %v382 = vadd.f32 %v304, %v381
      %383 = vmatmul.f32.gmra.mxu0 %v320
      %v384 = vpop.f32.mrf.mxu0
      %v385 = vadd.f32 %v304, %v384
      %386 = vmatmul.f32.gmra.mxu0 %v323
      %v387 = vpop.f32.mrf.mxu0
      %v388 = vadd.f32 %v304, %v387
      %389 = vmatmul.f32.gmra.mxu0 %v326
      %v390 = vpop.f32.mrf.mxu0
      %v391 = vadd.f32 %v304, %v390
      %392 = vmatmul.f32.gmra.mxu0 %v329
      %v393 = vpop.f32.mrf.mxu0
      %v394 = vadd.f32 %v304, %v393
      %395 = vmatmul.f32.gmra.mxu0 %v332
      %v396 = vpop.f32.mrf.mxu0
      %v397 = vadd.f32 %v304, %v396
      %398 = vmatmul.f32.gmra.mxu0 %v335
      %v399 = vpop.f32.mrf.mxu0
      %v400 = vadd.f32 %v304, %v399
      %401 = vmatmul.f32.gmra.mxu0 %v338
      %v402 = vpop.f32.mrf.mxu0
      %v403 = vadd.f32 %v304, %v402
      %404 = vmatmul.f32.gmra.mxu0 %v341
      %v405 = vpop.f32.mrf.mxu0
      %v406 = vadd.f32 %v304, %v405
      %407 = vmatmul.f32.gmra.mxu0 %v344
      %v408 = vpop.f32.mrf.mxu0
      %v409 = vadd.f32 %v304, %v408
      %410 = vmatmul.f32.gmra.mxu0 %v347
      %v411 = vpop.f32.mrf.mxu0
      %v412 = vadd.f32 %v304, %v411
      %413 = vmatmul.f32.gmra.mxu0 %v350
      %v414 = vpop.f32.mrf.mxu0
      %v415 = vadd.f32 %v304, %v414
      %416 = vmatmul.f32.gmra.mxu0 %v353
      %v417 = vpop.f32.mrf.mxu0
      %v418 = vadd.f32 %v304, %v417
      %419 = vdwg.mxu0
      %v420 = vmax.f32 %v373, 0.0
      %v421 = vmax.f32 %v376, 0.0
      %v422 = vmax.f32 %v379, 0.0
      %v423 = vmax.f32 %v382, 0.0
      %v424 = vmax.f32 %v385, 0.0
      %v425 = vmax.f32 %v388, 0.0
      %v426 = vmax.f32 %v391, 0.0
      %v427 = vmax.f32 %v394, 0.0
      %v428 = vmax.f32 %v397, 0.0
      %v429 = vmax.f32 %v400, 0.0
      %v430 = vmax.f32 %v403, 0.0
      %v431 = vmax.f32 %v406, 0.0
      %v432 = vmax.f32 %v409, 0.0
      %v433 = vmax.f32 %v412, 0.0
      %v434 = vmax.f32 %v415, 0.0
      %v435 = vmax.f32 %v418, 0.0
      %v436 = vld [vmem:[%s3] sm:$0xff]
      %v437 = vld [vmem:[%s3 + $0x8] sm:$0xff]
      %v438 = vld [vmem:[%s3 + $0x10] sm:$0xff]
      %v439 = vld [vmem:[%s3 + $0x18] sm:$0xff]
      %v440 = vld [vmem:[%s4] sm:$0x1]
      %v442 = vperm.slane %v440, 0
      %v445 = vsel %vm306, %v420, 0
      %v448 = vsel %vm306, %v421, 0
      %v451 = vsel %vm306, %v422, 0
      %v454 = vsel %vm306, %v423, 0
      %v457 = vsel %vm306, %v424, 0
      %v460 = vsel %vm306, %v425, 0
      %v463 = vsel %vm306, %v426, 0
      %v466 = vsel %vm306, %v427, 0
      %v469 = vsel %vm306, %v428, 0
      %v472 = vsel %vm306, %v429, 0
      %v475 = vsel %vm306, %v430, 0
      %v478 = vsel %vm306, %v431, 0
      %v481 = vsel %vm306, %v432, 0
      %v484 = vsel %vm306, %v433, 0
      %v487 = vsel %vm306, %v434, 0
      %v490 = vsel %vm306, %v435, 0
      %492 = vmatpush.msra.mxu0 0.0
      %493 = vmatpush.msra.mxu0 0.0
      %494 = vmatpush.msra.mxu0 0.0
      %495 = vmatpush.msra.mxu0 0.0
      %496 = vmatpush.msra.mxu0 0.0
      %497 = vmatpush.msra.mxu0 0.0
      %498 = vmatpush.msra.mxu0 0.0
      %499 = vmatpush.msra.mxu0 0.0
      %500 = vmatpush.msra.mxu0 0.0
      %501 = vmatpush.msra.mxu0 0.0
      %502 = vmatpush.msra.mxu0 0.0
      %503 = vmatpush.msra.mxu0 0.0
      %504 = vmatpush.msra.mxu0 %v439
      %505 = vmatpush.msra.mxu0 %v438
      %506 = vmatpush.msra.mxu0 %v437
      %507 = vmatpush.msra.mxu0 %v436
      %508 = vmatmul.f32.gmra.mxu0 %v445
      %v509 = vpop.f32.mrf.mxu0
      %v510 = vadd.f32 %v442, %v509
      %511 = vmatmul.f32.gmra.mxu0 %v448
      %v512 = vpop.f32.mrf.mxu0
      %v513 = vadd.f32 %v442, %v512
      %514 = vmatmul.f32.gmra.mxu0 %v451
      %v515 = vpop.f32.mrf.mxu0
      %v516 = vadd.f32 %v442, %v515
      %517 = vmatmul.f32.gmra.mxu0 %v454
      %v518 = vpop.f32.mrf.mxu0
      %v519 = vadd.f32 %v442, %v518
      %520 = vmatmul.f32.gmra.mxu0 %v457
      %v521 = vpop.f32.mrf.mxu0
      %v522 = vadd.f32 %v442, %v521
      %523 = vmatmul.f32.gmra.mxu0 %v460
      %v524 = vpop.f32.mrf.mxu0
      %v525 = vadd.f32 %v442, %v524
      %526 = vmatmul.f32.gmra.mxu0 %v463
      %v527 = vpop.f32.mrf.mxu0
      %v528 = vadd.f32 %v442, %v527
      %529 = vmatmul.f32.gmra.mxu0 %v466
      %v530 = vpop.f32.mrf.mxu0
      %v531 = vadd.f32 %v442, %v530
      %532 = vmatmul.f32.gmra.mxu0 %v469
      %v533 = vpop.f32.mrf.mxu0
      %v534 = vadd.f32 %v442, %v533
      %535 = vmatmul.f32.gmra.mxu0 %v472
      %v536 = vpop.f32.mrf.mxu0
      %v537 = vadd.f32 %v442, %v536
      %538 = vmatmul.f32.gmra.mxu0 %v475
      %v539 = vpop.f32.mrf.mxu0
      %v540 = vadd.f32 %v442, %v539
      %541 = vmatmul.f32.gmra.mxu0 %v478
      %v542 = vpop.f32.mrf.mxu0
      %v543 = vadd.f32 %v442, %v542
      %544 = vmatmul.f32.gmra.mxu0 %v481
      %v545 = vpop.f32.mrf.mxu0
      %v546 = vadd.f32 %v442, %v545
      %547 = vmatmul.f32.gmra.mxu0 %v484
      %v548 = vpop.f32.mrf.mxu0
      %v549 = vadd.f32 %v442, %v548
      %550 = vmatmul.f32.gmra.mxu0 %v487
      %v551 = vpop.f32.mrf.mxu0
      %v552 = vadd.f32 %v442, %v551
      %553 = vmatmul.f32.gmra.mxu0 %v490
      %v554 = vpop.f32.mrf.mxu0
      %v555 = vadd.f32 %v442, %v554
      %556 = vdwg.mxu0
      %v557 = vmax.f32 %v510, 0.0
      %v558 = vmax.f32 %v513, 0.0
      %v559 = vmax.f32 %v516, 0.0
      %v560 = vmax.f32 %v519, 0.0
      %v561 = vmax.f32 %v522, 0.0
      %v562 = vmax.f32 %v525, 0.0
      %v563 = vmax.f32 %v528, 0.0
      %v564 = vmax.f32 %v531, 0.0
      %v565 = vmax.f32 %v534, 0.0
      %v566 = vmax.f32 %v537, 0.0
      %v567 = vmax.f32 %v540, 0.0
      %v568 = vmax.f32 %v543, 0.0
      %v569 = vmax.f32 %v546, 0.0
      %v570 = vmax.f32 %v549, 0.0
      %v571 = vmax.f32 %v552, 0.0
      %v572 = vmax.f32 %v555, 0.0
      %v573 = vld [vmem:[%s5] sm:$0xff]
      %v574 = vld [vmem:[%s5 + $0x8] sm:$0xff]
      %v575 = vld [vmem:[%s5 + $0x10] sm:$0xff]
      %v576 = vld [vmem:[%s5 + $0x18] sm:$0xff]
      %v577 = vld [vmem:[%s6] sm:$0x1]
      %v579 = vperm.slane %v577, 0
      %v582 = vsel %vm306, %v557, 0
      %v585 = vsel %vm306, %v558, 0
      %v588 = vsel %vm306, %v559, 0
      %v591 = vsel %vm306, %v560, 0
      %v594 = vsel %vm306, %v561, 0
      %v597 = vsel %vm306, %v562, 0
      %v600 = vsel %vm306, %v563, 0
      %v603 = vsel %vm306, %v564, 0
      %v606 = vsel %vm306, %v565, 0
      %v609 = vsel %vm306, %v566, 0
      %v612 = vsel %vm306, %v567, 0
      %v615 = vsel %vm306, %v568, 0
      %v618 = vsel %vm306, %v569, 0
      %v621 = vsel %vm306, %v570, 0
      %v624 = vsel %vm306, %v571, 0
      %v627 = vsel %vm306, %v572, 0
      %629 = vmatpush.msra.mxu0 0.0
      %630 = vmatpush.msra.mxu0 0.0
      %631 = vmatpush.msra.mxu0 0.0
      %632 = vmatpush.msra.mxu0 0.0
      %633 = vmatpush.msra.mxu0 0.0
      %634 = vmatpush.msra.mxu0 0.0
      %635 = vmatpush.msra.mxu0 0.0
      %636 = vmatpush.msra.mxu0 0.0
      %637 = vmatpush.msra.mxu0 0.0
      %638 = vmatpush.msra.mxu0 0.0
      %639 = vmatpush.msra.mxu0 0.0
      %640 = vmatpush.msra.mxu0 0.0
      %641 = vmatpush.msra.mxu0 %v576
      %642 = vmatpush.msra.mxu0 %v575
      %643 = vmatpush.msra.mxu0 %v574
      %644 = vmatpush.msra.mxu0 %v573
      %645 = vmatmul.f32.gmra.mxu0 %v582
      %v646 = vpop.f32.mrf.mxu0
      %v647 = vadd.f32 %v579, %v646
      %648 = vmatmul.f32.gmra.mxu0 %v585
      %v649 = vpop.f32.mrf.mxu0
      %v650 = vadd.f32 %v579, %v649
      %651 = vmatmul.f32.gmra.mxu0 %v588
      %v652 = vpop.f32.mrf.mxu0
      %v653 = vadd.f32 %v579, %v652
      %654 = vmatmul.f32.gmra.mxu0 %v591
      %v655 = vpop.f32.mrf.mxu0
      %v656 = vadd.f32 %v579, %v655
      %657 = vmatmul.f32.gmra.mxu0 %v594
      %v658 = vpop.f32.mrf.mxu0
      %v659 = vadd.f32 %v579, %v658
      %660 = vmatmul.f32.gmra.mxu0 %v597
      %v661 = vpop.f32.mrf.mxu0
      %v662 = vadd.f32 %v579, %v661
      %663 = vmatmul.f32.gmra.mxu0 %v600
      %v664 = vpop.f32.mrf.mxu0
      %v665 = vadd.f32 %v579, %v664
      %666 = vmatmul.f32.gmra.mxu0 %v603
      %v667 = vpop.f32.mrf.mxu0
      %v668 = vadd.f32 %v579, %v667
      %669 = vmatmul.f32.gmra.mxu0 %v606
      %v670 = vpop.f32.mrf.mxu0
      %v671 = vadd.f32 %v579, %v670
      %672 = vmatmul.f32.gmra.mxu0 %v609
      %v673 = vpop.f32.mrf.mxu0
      %v674 = vadd.f32 %v579, %v673
      %675 = vmatmul.f32.gmra.mxu0 %v612
      %v676 = vpop.f32.mrf.mxu0
      %v677 = vadd.f32 %v579, %v676
      %678 = vmatmul.f32.gmra.mxu0 %v615
      %v679 = vpop.f32.mrf.mxu0
      %v680 = vadd.f32 %v579, %v679
      %681 = vmatmul.f32.gmra.mxu0 %v618
      %v682 = vpop.f32.mrf.mxu0
      %v683 = vadd.f32 %v579, %v682
      %684 = vmatmul.f32.gmra.mxu0 %v621
      %v685 = vpop.f32.mrf.mxu0
      %v686 = vadd.f32 %v579, %v685
      %687 = vmatmul.f32.gmra.mxu0 %v624
      %v688 = vpop.f32.mrf.mxu0
      %v689 = vadd.f32 %v579, %v688
      %690 = vmatmul.f32.gmra.mxu0 %v627
      %v691 = vpop.f32.mrf.mxu0
      %v692 = vadd.f32 %v579, %v691
      %693 = vdwg.mxu0
      %694 = vst.msk [vmem:[%s280] sm:$0xff] %vm306, %v647
      %695 = vst.msk [vmem:[%s280 + $0x8] sm:$0xff] %vm306, %v650
      %696 = vst.msk [vmem:[%s280 + $0x10] sm:$0xff] %vm306, %v653
      %697 = vst.msk [vmem:[%s280 + $0x18] sm:$0xff] %vm306, %v656
      %698 = vst.msk [vmem:[%s280 + $0x20] sm:$0xff] %vm306, %v659
      %699 = vst.msk [vmem:[%s280 + $0x28] sm:$0xff] %vm306, %v662
      %700 = vst.msk [vmem:[%s280 + $0x30] sm:$0xff] %vm306, %v665
      %701 = vst.msk [vmem:[%s280 + $0x38] sm:$0xff] %vm306, %v668
      %702 = vst.msk [vmem:[%s280 + $0x40] sm:$0xff] %vm306, %v671
      %703 = vst.msk [vmem:[%s280 + $0x48] sm:$0xff] %vm306, %v674
      %704 = vst.msk [vmem:[%s280 + $0x50] sm:$0xff] %vm306, %v677
      %705 = vst.msk [vmem:[%s280 + $0x58] sm:$0xff] %vm306, %v680
      %706 = vst.msk [vmem:[%s280 + $0x60] sm:$0xff] %vm306, %v683
      %707 = vst.msk [vmem:[%s280 + $0x68] sm:$0xff] %vm306, %v686
      %708 = vst.msk [vmem:[%s280 + $0x70] sm:$0xff] %vm306, %v689
      %709 = vst.msk [vmem:[%s280 + $0x78] sm:$0xff] %vm306, %v692
      %s710 = smul.u32 16, %s18
      %p711 = scmp.lt.s32.totalorder %s710, 31
      %s712 = scalar_select %p711, %s710, 31
      %s713 = smul.addr %s712, 8
      %s714 = scalar_lea.vmem %s7, %s713
      // Predicated region
      $region49: #{tpu_custom_call.1} parent=47 // pred_check
        %p715 = pneg %p188
      $region50: #{tpu_custom_call.1} parent=47 // pred_check_branch
        %717 = sbr.rel (%p715) target = $region52
      $region51: #{tpu_custom_call.1} parent=47 // pred_region
        %s718 = smul.u32 16, %s18
      $region52: #{tpu_custom_call.1} parent=47 // pred_fallthru
        _
    $region48: #{tpu_custom_call.1} parent=5 // pred_fallthru
      _
    %p719 = scmp.le.s32.totalorder 2, %s13
    // Predicated region
    $region53: #{tpu_custom_call.1} parent=5 // pred_check
      %p720 = pneg %p719
    $region54: #{tpu_custom_call.1} parent=5 // pred_check_branch
      %722 = sbr.rel (%p720) target = $region56
    $region55: #{tpu_custom_call.1} parent=5 // pred_region
      %s723 = ssub.s32 %s13, 2
      // Predicated region
      $region57: #{tpu_custom_call.1} parent=55 // pred_check
        %p724 = pneg %p194
      $region58: #{tpu_custom_call.1} parent=55 // pred_check_branch
        %726 = sbr.rel (%p724) target = $region60
      $region59: #{tpu_custom_call.1} parent=55 // pred_region
        %s727 = smul.u32 16, %s19
        %p728 = scmp.lt.s32.totalorder %s727, 31
        %s729 = scalar_select %p728, %s727, 31
        %s730 = smul.addr %s729, 8
        %s731 = scalar_lea.vmem %s7, %s730
      $region60: #{tpu_custom_call.1} parent=55 // pred_fallthru
        _
    $region56: #{tpu_custom_call.1} parent=5 // pred_fallthru
      _
  $region6: #{tpu_custom_call.1} parent=0 // loop_footer
    %s17 = sadd.s32 1, %s13
  $region7: #{tpu_custom_call.1} parent=0 // loop_footer_branch
    %12 = sbr.rel target = $region3
  $region8: #{tpu_custom_call.1} parent=0 // loop_exit
    _

// kernel: tpu_custom_call.1
$region0: #{tpu_custom_call.1}
  #allocation0 [shape = 'u32[]', space=smem, size = 0x4, offset = 0x4, fixed_abs, tag = 'smem constant byte address 0x4 - core index']
  #allocation1 [shape = 'u32[72,128]{1,0:T(1,128)}', space=vmem, size = 0x9000, scoped, tag = 'internal scratch']
  %s0 = inlined_call_operand.vmem [shape: f32[256,32], index: 0, kind: input, shape index: {}]
  %s1 = inlined_call_operand.vmem [shape: f32[32,32], index: 1, kind: input, shape index: {}]
  %s2 = inlined_call_operand.vmem [shape: f32[1,32], index: 2, kind: input, shape index: {}]
  %s3 = inlined_call_operand.vmem [shape: f32[32,32], index: 3, kind: input, shape index: {}]
  %s4 = inlined_call_operand.vmem [shape: f32[1,32], index: 4, kind: input, shape index: {}]
  %s5 = inlined_call_operand.vmem [shape: f32[32,32], index: 5, kind: input, shape index: {}]
  %s6 = inlined_call_operand.vmem [shape: f32[1,32], index: 6, kind: input, shape index: {}]
  %s7 = inlined_call_operand.vmem [shape: f32[256,32], index: 7, kind: output, shape index: {}]
  %s8 = sld [smem:[#allocation0]]
  $region61: #{tpu_custom_call.1} parent=0
    _
  %s10 = ssub.s32 1, %s8
  %s11 = scalar_select 0, %s10, %s8
  loop: start=0, step=1, limit=4
  $region2: #{tpu_custom_call.1} parent=0 // loop_pre_header
    _
  $region3: #{tpu_custom_call.1} parent=0 // loop_header
    %s13 = sphi 0, %s17
    %p14 = scmp.ge.s32.totalorder %s13, 4
    %s23 = sphi 0, %s25
    %s26 = sphi 0, %s23
    %s27 = sphi 0, %s26
    %s43 = sphi 0, %s27
    %s47 = sphi 0, %s47
    %s49 = sphi 0, %s47
    %s50 = sphi 0, %s49
    %s64 = sphi 0, %s50
    %s68 = sphi 0, %s68
    %s70 = sphi 0, %s68
    %s71 = sphi 0, %s70
    %s85 = sphi 0, %s71
    %s89 = sphi 0, %s89
    %s91 = sphi 0, %s89
    %s92 = sphi 0, %s91
    %s106 = sphi 0, %s92
    %s110 = sphi 0, %s110
    %s112 = sphi 0, %s110
    %s113 = sphi 0, %s112
    %s127 = sphi 0, %s113
    %s131 = sphi 0, %s131
    %s133 = sphi 0, %s131
    %s134 = sphi 0, %s133
    %s148 = sphi 0, %s134
    %s152 = sphi 0, %s152
    %s154 = sphi 0, %s152
    %s155 = sphi 0, %s154
    %s169 = sphi 0, %s155
    %s175 = sphi 0, %s177
    %s178 = sphi 0, %s175
    %s179 = sphi 0, %s178
    %s195 = sphi 0, %s179
  $region4: #{tpu_custom_call.1} parent=0 // loop_header_branch
    %16 = sbr.rel (%p14) target = $region8
  $region5: #{tpu_custom_call.1} parent=0 // loop_body
    %s18 = ssub.s32 %s13, 1
    %s19 = ssub.s32 %s13, 2
    %s20 = sadd.s32 %s13, 1
    %s21 = ssub.s32 %s13, %s20
    %p22 = scmp.eq.s32.totalorder %s21, 0
    %s24 = sadd.s32 %s23, 1
    %s25 = scalar_select %p22, %s23, %s24
    %p28 = pneg %p22
    %p29 = scmp.eq.s32.totalorder %s13, 1
    %p30 = por %p28, %p29
    %p31 = scmp.ne.s32.totalorder %s23, %s26
    %p32 = scmp.eq.s32.totalorder %s13, 0
    %p33 = por %p31, %p32
    %p34 = scmp.ne.s32.totalorder %s23, %s26
    %p35 = scmp.eq.s32.totalorder %s18, 1
    %p36 = por %p34, %p35
    %p37 = scmp.ne.s32.totalorder %s26, %s27
    %p38 = scmp.eq.s32.totalorder %s18, 0
    %p39 = por %p37, %p38
    %p40 = scmp.ne.s32.totalorder %s26, %s27
    %p41 = scmp.eq.s32.totalorder %s19, 1
    %p42 = por %p40, %p41
    %p44 = scmp.ne.s32.totalorder %s27, %s43
    %p45 = scmp.eq.s32.totalorder %s19, 0
    %p46 = por %p44, %p45
    %s48 = sadd.s32 %s47, 1
    %p51 = scmp.eq.s32.totalorder %s13, 1
    %p52 = scmp.ne.s32.totalorder %s47, %s49
    %p53 = scmp.eq.s32.totalorder %s13, 0
    %p54 = por %p52, %p53
    %p55 = scmp.ne.s32.totalorder %s47, %s49
    %p56 = scmp.eq.s32.totalorder %s18, 1
    %p57 = por %p55, %p56
    %p58 = scmp.ne.s32.totalorder %s49, %s50
    %p59 = scmp.eq.s32.totalorder %s18, 0
    %p60 = por %p58, %p59
    %p61 = scmp.ne.s32.totalorder %s49, %s50
    %p62 = scmp.eq.s32.totalorder %s19, 1
    %p63 = por %p61, %p62
    %p65 = scmp.ne.s32.totalorder %s50, %s64
    %p66 = scmp.eq.s32.totalorder %s19, 0
    %p67 = por %p65, %p66
    %s69 = sadd.s32 %s68, 1
    %p72 = scmp.eq.s32.totalorder %s13, 1
    %p73 = scmp.ne.s32.totalorder %s68, %s70
    %p74 = scmp.eq.s32.totalorder %s13, 0
    %p75 = por %p73, %p74
    %p76 = scmp.ne.s32.totalorder %s68, %s70
    %p77 = scmp.eq.s32.totalorder %s18, 1
    %p78 = por %p76, %p77
    %p79 = scmp.ne.s32.totalorder %s70, %s71
    %p80 = scmp.eq.s32.totalorder %s18, 0
    %p81 = por %p79, %p80
    %p82 = scmp.ne.s32.totalorder %s70, %s71
    %p83 = scmp.eq.s32.totalorder %s19, 1
    %p84 = por %p82, %p83
    %p86 = scmp.ne.s32.totalorder %s71, %s85
    %p87 = scmp.eq.s32.totalorder %s19, 0
    %p88 = por %p86, %p87
    %s90 = sadd.s32 %s89, 1
    %p93 = scmp.eq.s32.totalorder %s13, 1
    %p94 = scmp.ne.s32.totalorder %s89, %s91
    %p95 = scmp.eq.s32.totalorder %s13, 0
    %p96 = por %p94, %p95
    %p97 = scmp.ne.s32.totalorder %s89, %s91
    %p98 = scmp.eq.s32.totalorder %s18, 1
    %p99 = por %p97, %p98
    %p100 = scmp.ne.s32.totalorder %s91, %s92
    %p101 = scmp.eq.s32.totalorder %s18, 0
    %p102 = por %p100, %p101
    %p103 = scmp.ne.s32.totalorder %s91, %s92
    %p104 = scmp.eq.s32.totalorder %s19, 1
    %p105 = por %p103, %p104
    %p107 = scmp.ne.s32.totalorder %s92, %s106
    %p108 = scmp.eq.s32.totalorder %s19, 0
    %p109 = por %p107, %p108
    %s111 = sadd.s32 %s110, 1
    %p114 = scmp.eq.s32.totalorder %s13, 1
    %p115 = scmp.ne.s32.totalorder %s110, %s112
    %p116 = scmp.eq.s32.totalorder %s13, 0
    %p117 = por %p115, %p116
    %p118 = scmp.ne.s32.totalorder %s110, %s112
    %p119 = scmp.eq.s32.totalorder %s18, 1
    %p120 = por %p118, %p119
    %p121 = scmp.ne.s32.totalorder %s112, %s113
    %p122 = scmp.eq.s32.totalorder %s18, 0
    %p123 = por %p121, %p122
    %p124 = scmp.ne.s32.totalorder %s112, %s113
    %p125 = scmp.eq.s32.totalorder %s19, 1
    %p126 = por %p124, %p125
    %p128 = scmp.ne.s32.totalorder %s113, %s127
    %p129 = scmp.eq.s32.totalorder %s19, 0
    %p130 = por %p128, %p129
    %s132 = sadd.s32 %s131, 1
    %p135 = scmp.eq.s32.totalorder %s13, 1
    %p136 = scmp.ne.s32.totalorder %s131, %s133
    %p137 = scmp.eq.s32.totalorder %s13, 0
    %p138 = por %p136, %p137
    %p139 = scmp.ne.s32.totalorder %s131, %s133
    %p140 = scmp.eq.s32.totalorder %s18, 1
    %p141 = por %p139, %p140
    %p142 = scmp.ne.s32.totalorder %s133, %s134
    %p143 = scmp.eq.s32.totalorder %s18, 0
    %p144 = por %p142, %p143
    %p145 = scmp.ne.s32.totalorder %s133, %s134
    %p146 = scmp.eq.s32.totalorder %s19, 1
    %p147 = por %p145, %p146
    %p149 = scmp.ne.s32.totalorder %s134, %s148
    %p150 = scmp.eq.s32.totalorder %s19, 0
    %p151 = por %p149, %p150
    %s153 = sadd.s32 %s152, 1
    %p156 = scmp.eq.s32.totalorder %s13, 1
    %p157 = scmp.ne.s32.totalorder %s152, %s154
    %p158 = scmp.eq.s32.totalorder %s13, 0
    %p159 = por %p157, %p158
    %p160 = scmp.ne.s32.totalorder %s152, %s154
    %p161 = scmp.eq.s32.totalorder %s18, 1
    %p162 = por %p160, %p161
    %p163 = scmp.ne.s32.totalorder %s154, %s155
    %p164 = scmp.eq.s32.totalorder %s18, 0
    %p165 = por %p163, %p164
    %p166 = scmp.ne.s32.totalorder %s154, %s155
    %p167 = scmp.eq.s32.totalorder %s19, 1
    %p168 = por %p166, %p167
    %p170 = scmp.ne.s32.totalorder %s155, %s169
    %p171 = scmp.eq.s32.totalorder %s19, 0
    %p172 = por %p170, %p171
    %s173 = ssub.s32 %s13, %s20
    %p174 = scmp.eq.s32.totalorder %s173, 0
    %s176 = sadd.s32 %s175, 1
    %s177 = scalar_select %p174, %s175, %s176
    %p180 = pneg %p174
    %p181 = scmp.eq.s32.totalorder %s13, 1
    %p182 = por %p180, %p181
    %p183 = scmp.ne.s32.totalorder %s175, %s178
    %p184 = scmp.eq.s32.totalorder %s13, 0
    %p185 = por %p183, %p184
    %p186 = scmp.ne.s32.totalorder %s175, %s178
    %p187 = scmp.eq.s32.totalorder %s18, 1
    %p188 = por %p186, %p187
    %p189 = scmp.ne.s32.totalorder %s178, %s179
    %p190 = scmp.eq.s32.totalorder %s18, 0
    %p191 = por %p189, %p190
    %p192 = scmp.ne.s32.totalorder %s178, %s179
    %p193 = scmp.eq.s32.totalorder %s19, 1
    %p194 = por %p192, %p193
    %p196 = scmp.ne.s32.totalorder %s179, %s195
    %p197 = scmp.eq.s32.totalorder %s19, 0
    %p198 = por %p196, %p197
    %p199 = scmp.le.s32.totalorder 1, %s13
    %p200 = scmp.lt.s32.totalorder %s13, 3
    %p201 = pnand %p199, %p200
    %p202 = pneg %p201
    // Predicated region
    $region9: #{tpu_custom_call.1} parent=5 // pred_check
      _
    $region10: #{tpu_custom_call.1} parent=5 // pred_check_branch
      %204 = sbr.rel (%p201) target = $region12
    $region11: #{tpu_custom_call.1} parent=5 // pred_region
      %s205 = ssub.s32 %s13, 1
      // Predicated region
      $region13: #{tpu_custom_call.1} parent=11 // pred_check
        %p206 = pneg %p60
      $region14: #{tpu_custom_call.1} parent=11 // pred_check_branch
        %208 = sbr.rel (%p206) target = $region16
      $region15: #{tpu_custom_call.1} parent=11 // pred_region
        _
      $region16: #{tpu_custom_call.1} parent=11 // pred_fallthru
        _
      // Predicated region
      $region17: #{tpu_custom_call.1} parent=11 // pred_check
        %p209 = pneg %p81
      $region18: #{tpu_custom_call.1} parent=11 // pred_check_branch
        %211 = sbr.rel (%p209) target = $region20
      $region19: #{tpu_custom_call.1} parent=11 // pred_region
        _
      $region20: #{tpu_custom_call.1} parent=11 // pred_fallthru
        _
      // Predicated region
      $region21: #{tpu_custom_call.1} parent=11 // pred_check
        %p212 = pneg %p102
      $region22: #{tpu_custom_call.1} parent=11 // pred_check_branch
        %214 = sbr.rel (%p212) target = $region24
      $region23: #{tpu_custom_call.1} parent=11 // pred_region
        _
      $region24: #{tpu_custom_call.1} parent=11 // pred_fallthru
        _
      // Predicated region
      $region25: #{tpu_custom_call.1} parent=11 // pred_check
        %p215 = pneg %p123
      $region26: #{tpu_custom_call.1} parent=11 // pred_check_branch
        %217 = sbr.rel (%p215) target = $region28
      $region27: #{tpu_custom_call.1} parent=11 // pred_region
        _
      $region28: #{tpu_custom_call.1} parent=11 // pred_fallthru
        _
      // Predicated region
      $region29: #{tpu_custom_call.1} parent=11 // pred_check
        %p218 = pneg %p144
      $region30: #{tpu_custom_call.1} parent=11 // pred_check_branch
        %220 = sbr.rel (%p218) target = $region32
      $region31: #{tpu_custom_call.1} parent=11 // pred_region
        _
      $region32: #{tpu_custom_call.1} parent=11 // pred_fallthru
        _
      // Predicated region
      $region33: #{tpu_custom_call.1} parent=11 // pred_check
        %p221 = pneg %p165
      $region34: #{tpu_custom_call.1} parent=11 // pred_check_branch
        %223 = sbr.rel (%p221) target = $region36
      $region35: #{tpu_custom_call.1} parent=11 // pred_region
        _
      $region36: #{tpu_custom_call.1} parent=11 // pred_fallthru
        _
    $region12: #{tpu_custom_call.1} parent=5 // pred_fallthru
      _
    %p224 = scmp.lt.s32.totalorder %s13, 2
    // Predicated region
    $region37: #{tpu_custom_call.1} parent=5 // pred_check
      %p225 = pneg %p224
    $region38: #{tpu_custom_call.1} parent=5 // pred_check_branch
      %227 = sbr.rel (%p225) target = $region40
    $region39: #{tpu_custom_call.1} parent=5 // pred_region
      // Predicated region
      $region41: #{tpu_custom_call.1} parent=39 // pred_check
        %p228 = pneg %p33
      $region42: #{tpu_custom_call.1} parent=39 // pred_check_branch
        %230 = sbr.rel (%p228) target = $region44
      $region43: #{tpu_custom_call.1} parent=39 // pred_region
        %s231 = smul.u32 16, %s13
        %p232 = scmp.lt.s32.totalorder %s231, 31
        %s233 = scalar_select %p232, %s231, 31
        %s234 = smul.addr %s233, 8
        %s235 = scalar_lea.vmem %s0, %s234
        %s236 = smul.u32 16, %s13
      $region44: #{tpu_custom_call.1} parent=39 // pred_fallthru
        _
    $region40: #{tpu_custom_call.1} parent=5 // pred_fallthru
      _
    %p237 = scmp.le.s32.totalorder 1, %s13
    %p238 = scmp.lt.s32.totalorder %s13, 3
    %p239 = pnand %p237, %p238
    %p240 = pneg %p239
    // Predicated region
    $region45: #{tpu_custom_call.1} parent=5 // pred_check
      _
    $region46: #{tpu_custom_call.1} parent=5 // pred_check_branch
      %242 = sbr.rel (%p239) target = $region48
    $region47: #{tpu_custom_call.1} parent=5 // pred_region
      %s243 = ssub.s32 %s13, 1
      %s244 = smul.u32 16, %s18
      %p245 = scmp.lt.s32.totalorder %s244, 31
      %s246 = scalar_select %p245, %s244, 31
      %s247 = smul.addr %s246, 8
      %s248 = scalar_lea.vmem %s0, %s247
      %p249 = pneg %p39
      %p250 = pneg %p36
      %p251 = pneg %p60
      %p252 = pneg %p57
      %p253 = pneg %p81
      %p254 = pneg %p78
      %p255 = pneg %p102
      %p256 = pneg %p99
      %p257 = pneg %p123
      %p258 = pneg %p120
      %p259 = pneg %p144
      %p260 = pneg %p141
      %p261 = pneg %p165
      %p262 = pneg %p162
      %p263 = pneg %p191
      %p264 = pneg %p188
      %s265 = smul.u32 16, %s18
      %p266 = scmp.lt.s32.totalorder %s265, 31
      %s267 = scalar_select %p266, %s265, 31
      %s268 = smul.addr %s267, 8
      %s269 = scalar_lea.vmem %s7, %s268
      %s270 = smul.u32 16, %s18
      %p271 = scmp.lt.s32.totalorder %s270, 31
      %s272 = scalar_select %p271, %s270, 31
      %s273 = smul.addr %s272, 8
      %s274 = scalar_lea.vmem %s0, %s273
      %s275 = smul.u32 16, %s18
      %s276 = smul.u32 16, %s18
      %p277 = scmp.lt.s32.totalorder %s276, 31
      %s278 = scalar_select %p277, %s276, 31
      %s279 = smul.addr %s278, 8
      %s280 = scalar_lea.vmem %s7, %s279
      %s281 = smul.u32 16, %s18
      %v282 = vld [vmem:[%s274] sm:$0xff]
      %v283 = vld [vmem:[%s274 + $0x8] sm:$0xff]
      %v284 = vld [vmem:[%s274 + $0x10] sm:$0xff]
      %v285 = vld [vmem:[%s274 + $0x18] sm:$0xff]
      %v286 = vld [vmem:[%s274 + $0x20] sm:$0xff]
      %v287 = vld [vmem:[%s274 + $0x28] sm:$0xff]
      %v288 = vld [vmem:[%s274 + $0x30] sm:$0xff]
      %v289 = vld [vmem:[%s274 + $0x38] sm:$0xff]
      %v290 = vld [vmem:[%s274 + $0x40] sm:$0xff]
      %v291 = vld [vmem:[%s274 + $0x48] sm:$0xff]
      %v292 = vld [vmem:[%s274 + $0x50] sm:$0xff]
      %v293 = vld [vmem:[%s274 + $0x58] sm:$0xff]
      %v294 = vld [vmem:[%s274 + $0x60] sm:$0xff]
      %v295 = vld [vmem:[%s274 + $0x68] sm:$0xff]
      %v296 = vld [vmem:[%s274 + $0x70] sm:$0xff]
      %v297 = vld [vmem:[%s274 + $0x78] sm:$0xff]
      %v298 = vld [vmem:[%s1] sm:$0xff]
      %v299 = vld [vmem:[%s1 + $0x8] sm:$0xff]
      %v300 = vld [vmem:[%s1 + $0x10] sm:$0xff]
      %v301 = vld [vmem:[%s1 + $0x18] sm:$0xff]
      %v302 = vld [vmem:[%s2] sm:$0x1]
      %v304 = vperm.slane %v302, 0
      %vm306 = vcmask 261120
      %v308 = vsel %vm306, %v282, 0
      %v311 = vsel %vm306, %v283, 0
      %v314 = vsel %vm306, %v284, 0
      %v317 = vsel %vm306, %v285, 0
      %v320 = vsel %vm306, %v286, 0
      %v323 = vsel %vm306, %v287, 0
      %v326 = vsel %vm306, %v288, 0
      %v329 = vsel %vm306, %v289, 0
      %v332 = vsel %vm306, %v290, 0
      %v335 = vsel %vm306, %v291, 0
      %v338 = vsel %vm306, %v292, 0
      %v341 = vsel %vm306, %v293, 0
      %v344 = vsel %vm306, %v294, 0
      %v347 = vsel %vm306, %v295, 0
      %v350 = vsel %vm306, %v296, 0
      %v353 = vsel %vm306, %v297, 0
      %355 = vmatpush.msra.mxu0 0.0
      %356 = vmatpush.msra.mxu0 0.0
      %357 = vmatpush.msra.mxu0 0.0
      %358 = vmatpush.msra.mxu0 0.0
      %359 = vmatpush.msra.mxu0 0.0
      %360 = vmatpush.msra.mxu0 0.0
      %361 = vmatpush.msra.mxu0 0.0
      %362 = vmatpush.msra.mxu0 0.0
      %363 = vmatpush.msra.mxu0 0.0
      %364 = vmatpush.msra.mxu0 0.0
      %365 = vmatpush.msra.mxu0 0.0
      %366 = vmatpush.msra.mxu0 0.0
      %367 = vmatpush.msra.mxu0 %v301
      %368 = vmatpush.msra.mxu0 %v300
      %369 = vmatpush.msra.mxu0 %v299
      %370 = vmatpush.msra.mxu0 %v298
      %371 = vmatmul.f32.gmra.mxu0 %v308
      %v372 = vpop.f32.mrf.mxu0
      %v373 = vadd.f32 %v304, %v372
      %374 = vmatmul.f32.gmra.mxu0 %v311
      %v375 = vpop.f32.mrf.mxu0
      %v376 = vadd.f32 %v304, %v375
      %377 = vmatmul.f32.gmra.mxu0 %v314
      %v378 = vpop.f32.mrf.mxu0
      %v379 = vadd.f32 %v304, %v378
      %380 = vmatmul.f32.gmra.mxu0 %v317
      %v381 = vpop.f32.mrf.mxu0
      %v382 = vadd.f32 %v304, %v381
      %383 = vmatmul.f32.gmra.mxu0 %v320
      %v384 = vpop.f32.mrf.mxu0
      %v385 = vadd.f32 %v304, %v384
      %386 = vmatmul.f32.gmra.mxu0 %v323
      %v387 = vpop.f32.mrf.mxu0
      %v388 = vadd.f32 %v304, %v387
      %389 = vmatmul.f32.gmra.mxu0 %v326
      %v390 = vpop.f32.mrf.mxu0
      %v391 = vadd.f32 %v304, %v390
      %392 = vmatmul.f32.gmra.mxu0 %v329
      %v393 = vpop.f32.mrf.mxu0
      %v394 = vadd.f32 %v304, %v393
      %395 = vmatmul.f32.gmra.mxu0 %v332
      %v396 = vpop.f32.mrf.mxu0
      %v397 = vadd.f32 %v304, %v396
      %398 = vmatmul.f32.gmra.mxu0 %v335
      %v399 = vpop.f32.mrf.mxu0
      %v400 = vadd.f32 %v304, %v399
      %401 = vmatmul.f32.gmra.mxu0 %v338
      %v402 = vpop.f32.mrf.mxu0
      %v403 = vadd.f32 %v304, %v402
      %404 = vmatmul.f32.gmra.mxu0 %v341
      %v405 = vpop.f32.mrf.mxu0
      %v406 = vadd.f32 %v304, %v405
      %407 = vmatmul.f32.gmra.mxu0 %v344
      %v408 = vpop.f32.mrf.mxu0
      %v409 = vadd.f32 %v304, %v408
      %410 = vmatmul.f32.gmra.mxu0 %v347
      %v411 = vpop.f32.mrf.mxu0
      %v412 = vadd.f32 %v304, %v411
      %413 = vmatmul.f32.gmra.mxu0 %v350
      %v414 = vpop.f32.mrf.mxu0
      %v415 = vadd.f32 %v304, %v414
      %416 = vmatmul.f32.gmra.mxu0 %v353
      %v417 = vpop.f32.mrf.mxu0
      %v418 = vadd.f32 %v304, %v417
      %419 = vdwg.mxu0
      %v420 = vmax.f32 %v373, 0.0
      %v421 = vmax.f32 %v376, 0.0
      %v422 = vmax.f32 %v379, 0.0
      %v423 = vmax.f32 %v382, 0.0
      %v424 = vmax.f32 %v385, 0.0
      %v425 = vmax.f32 %v388, 0.0
      %v426 = vmax.f32 %v391, 0.0
      %v427 = vmax.f32 %v394, 0.0
      %v428 = vmax.f32 %v397, 0.0
      %v429 = vmax.f32 %v400, 0.0
      %v430 = vmax.f32 %v403, 0.0
      %v431 = vmax.f32 %v406, 0.0
      %v432 = vmax.f32 %v409, 0.0
      %v433 = vmax.f32 %v412, 0.0
      %v434 = vmax.f32 %v415, 0.0
      %v435 = vmax.f32 %v418, 0.0
      %v436 = vld [vmem:[%s3] sm:$0xff]
      %v437 = vld [vmem:[%s3 + $0x8] sm:$0xff]
      %v438 = vld [vmem:[%s3 + $0x10] sm:$0xff]
      %v439 = vld [vmem:[%s3 + $0x18] sm:$0xff]
      %v440 = vld [vmem:[%s4] sm:$0x1]
      %v442 = vperm.slane %v440, 0
      %v445 = vsel %vm306, %v420, 0
      %v448 = vsel %vm306, %v421, 0
      %v451 = vsel %vm306, %v422, 0
      %v454 = vsel %vm306, %v423, 0
      %v457 = vsel %vm306, %v424, 0
      %v460 = vsel %vm306, %v425, 0
      %v463 = vsel %vm306, %v426, 0
      %v466 = vsel %vm306, %v427, 0
      %v469 = vsel %vm306, %v428, 0
      %v472 = vsel %vm306, %v429, 0
      %v475 = vsel %vm306, %v430, 0
      %v478 = vsel %vm306, %v431, 0
      %v481 = vsel %vm306, %v432, 0
      %v484 = vsel %vm306, %v433, 0
      %v487 = vsel %vm306, %v434, 0
      %v490 = vsel %vm306, %v435, 0
      %492 = vmatpush.msra.mxu0 0.0
      %493 = vmatpush.msra.mxu0 0.0
      %494 = vmatpush.msra.mxu0 0.0
      %495 = vmatpush.msra.mxu0 0.0
      %496 = vmatpush.msra.mxu0 0.0
      %497 = vmatpush.msra.mxu0 0.0
      %498 = vmatpush.msra.mxu0 0.0
      %499 = vmatpush.msra.mxu0 0.0
      %500 = vmatpush.msra.mxu0 0.0
      %501 = vmatpush.msra.mxu0 0.0
      %502 = vmatpush.msra.mxu0 0.0
      %503 = vmatpush.msra.mxu0 0.0
      %504 = vmatpush.msra.mxu0 %v439
      %505 = vmatpush.msra.mxu0 %v438
      %506 = vmatpush.msra.mxu0 %v437
      %507 = vmatpush.msra.mxu0 %v436
      %508 = vmatmul.f32.gmra.mxu0 %v445
      %v509 = vpop.f32.mrf.mxu0
      %v510 = vadd.f32 %v442, %v509
      %511 = vmatmul.f32.gmra.mxu0 %v448
      %v512 = vpop.f32.mrf.mxu0
      %v513 = vadd.f32 %v442, %v512
      %514 = vmatmul.f32.gmra.mxu0 %v451
      %v515 = vpop.f32.mrf.mxu0
      %v516 = vadd.f32 %v442, %v515
      %517 = vmatmul.f32.gmra.mxu0 %v454
      %v518 = vpop.f32.mrf.mxu0
      %v519 = vadd.f32 %v442, %v518
      %520 = vmatmul.f32.gmra.mxu0 %v457
      %v521 = vpop.f32.mrf.mxu0
      %v522 = vadd.f32 %v442, %v521
      %523 = vmatmul.f32.gmra.mxu0 %v460
      %v524 = vpop.f32.mrf.mxu0
      %v525 = vadd.f32 %v442, %v524
      %526 = vmatmul.f32.gmra.mxu0 %v463
      %v527 = vpop.f32.mrf.mxu0
      %v528 = vadd.f32 %v442, %v527
      %529 = vmatmul.f32.gmra.mxu0 %v466
      %v530 = vpop.f32.mrf.mxu0
      %v531 = vadd.f32 %v442, %v530
      %532 = vmatmul.f32.gmra.mxu0 %v469
      %v533 = vpop.f32.mrf.mxu0
      %v534 = vadd.f32 %v442, %v533
      %535 = vmatmul.f32.gmra.mxu0 %v472
      %v536 = vpop.f32.mrf.mxu0
      %v537 = vadd.f32 %v442, %v536
      %538 = vmatmul.f32.gmra.mxu0 %v475
      %v539 = vpop.f32.mrf.mxu0
      %v540 = vadd.f32 %v442, %v539
      %541 = vmatmul.f32.gmra.mxu0 %v478
      %v542 = vpop.f32.mrf.mxu0
      %v543 = vadd.f32 %v442, %v542
      %544 = vmatmul.f32.gmra.mxu0 %v481
      %v545 = vpop.f32.mrf.mxu0
      %v546 = vadd.f32 %v442, %v545
      %547 = vmatmul.f32.gmra.mxu0 %v484
      %v548 = vpop.f32.mrf.mxu0
      %v549 = vadd.f32 %v442, %v548
      %550 = vmatmul.f32.gmra.mxu0 %v487
      %v551 = vpop.f32.mrf.mxu0
      %v552 = vadd.f32 %v442, %v551
      %553 = vmatmul.f32.gmra.mxu0 %v490
      %v554 = vpop.f32.mrf.mxu0
      %v555 = vadd.f32 %v442, %v554
      %556 = vdwg.mxu0
      %v557 = vmax.f32 %v510, 0.0
      %v558 = vmax.f32 %v513, 0.0
      %v559 = vmax.f32 %v516, 0.0
      %v560 = vmax.f32 %v519, 0.0
      %v561 = vmax.f32 %v522, 0.0
      %v562 = vmax.f32 %v525, 0.0
      %v563 = vmax.f32 %v528, 0.0
      %v564 = vmax.f32 %v531, 0.0
      %v565 = vmax.f32 %v534, 0.0
      %v566 = vmax.f32 %v537, 0.0
      %v567 = vmax.f32 %v540, 0.0
      %v568 = vmax.f32 %v543, 0.0
      %v569 = vmax.f32 %v546, 0.0
      %v570 = vmax.f32 %v549, 0.0
      %v571 = vmax.f32 %v552, 0.0
      %v572 = vmax.f32 %v555, 0.0
      %v573 = vld [vmem:[%s5] sm:$0xff]
      %v574 = vld [vmem:[%s5 + $0x8] sm:$0xff]
      %v575 = vld [vmem:[%s5 + $0x10] sm:$0xff]
      %v576 = vld [vmem:[%s5 + $0x18] sm:$0xff]
      %v577 = vld [vmem:[%s6] sm:$0x1]
      %v579 = vperm.slane %v577, 0
      %v582 = vsel %vm306, %v557, 0
      %v585 = vsel %vm306, %v558, 0
      %v588 = vsel %vm306, %v559, 0
      %v591 = vsel %vm306, %v560, 0
      %v594 = vsel %vm306, %v561, 0
      %v597 = vsel %vm306, %v562, 0
      %v600 = vsel %vm306, %v563, 0
      %v603 = vsel %vm306, %v564, 0
      %v606 = vsel %vm306, %v565, 0
      %v609 = vsel %vm306, %v566, 0
      %v612 = vsel %vm306, %v567, 0
      %v615 = vsel %vm306, %v568, 0
      %v618 = vsel %vm306, %v569, 0
      %v621 = vsel %vm306, %v570, 0
      %v624 = vsel %vm306, %v571, 0
      %v627 = vsel %vm306, %v572, 0
      %629 = vmatpush.msra.mxu0 0.0
      %630 = vmatpush.msra.mxu0 0.0
      %631 = vmatpush.msra.mxu0 0.0
      %632 = vmatpush.msra.mxu0 0.0
      %633 = vmatpush.msra.mxu0 0.0
      %634 = vmatpush.msra.mxu0 0.0
      %635 = vmatpush.msra.mxu0 0.0
      %636 = vmatpush.msra.mxu0 0.0
      %637 = vmatpush.msra.mxu0 0.0
      %638 = vmatpush.msra.mxu0 0.0
      %639 = vmatpush.msra.mxu0 0.0
      %640 = vmatpush.msra.mxu0 0.0
      %641 = vmatpush.msra.mxu0 %v576
      %642 = vmatpush.msra.mxu0 %v575
      %643 = vmatpush.msra.mxu0 %v574
      %644 = vmatpush.msra.mxu0 %v573
      %645 = vmatmul.f32.gmra.mxu0 %v582
      %v646 = vpop.f32.mrf.mxu0
      %v647 = vadd.f32 %v579, %v646
      %648 = vmatmul.f32.gmra.mxu0 %v585
      %v649 = vpop.f32.mrf.mxu0
      %v650 = vadd.f32 %v579, %v649
      %651 = vmatmul.f32.gmra.mxu0 %v588
      %v652 = vpop.f32.mrf.mxu0
      %v653 = vadd.f32 %v579, %v652
      %654 = vmatmul.f32.gmra.mxu0 %v591
      %v655 = vpop.f32.mrf.mxu0
      %v656 = vadd.f32 %v579, %v655
      %657 = vmatmul.f32.gmra.mxu0 %v594
      %v658 = vpop.f32.mrf.mxu0
      %v659 = vadd.f32 %v579, %v658
      %660 = vmatmul.f32.gmra.mxu0 %v597
      %v661 = vpop.f32.mrf.mxu0
      %v662 = vadd.f32 %v579, %v661
      %663 = vmatmul.f32.gmra.mxu0 %v600
      %v664 = vpop.f32.mrf.mxu0
      %v665 = vadd.f32 %v579, %v664
      %666 = vmatmul.f32.gmra.mxu0 %v603
      %v667 = vpop.f32.mrf.mxu0
      %v668 = vadd.f32 %v579, %v667
      %669 = vmatmul.f32.gmra.mxu0 %v606
      %v670 = vpop.f32.mrf.mxu0
      %v671 = vadd.f32 %v579, %v670
      %672 = vmatmul.f32.gmra.mxu0 %v609
      %v673 = vpop.f32.mrf.mxu0
      %v674 = vadd.f32 %v579, %v673
      %675 = vmatmul.f32.gmra.mxu0 %v612
      %v676 = vpop.f32.mrf.mxu0
      %v677 = vadd.f32 %v579, %v676
      %678 = vmatmul.f32.gmra.mxu0 %v615
      %v679 = vpop.f32.mrf.mxu0
      %v680 = vadd.f32 %v579, %v679
      %681 = vmatmul.f32.gmra.mxu0 %v618
      %v682 = vpop.f32.mrf.mxu0
      %v683 = vadd.f32 %v579, %v682
      %684 = vmatmul.f32.gmra.mxu0 %v621
      %v685 = vpop.f32.mrf.mxu0
      %v686 = vadd.f32 %v579, %v685
      %687 = vmatmul.f32.gmra.mxu0 %v624
      %v688 = vpop.f32.mrf.mxu0
      %v689 = vadd.f32 %v579, %v688
      %690 = vmatmul.f32.gmra.mxu0 %v627
      %v691 = vpop.f32.mrf.mxu0
      %v692 = vadd.f32 %v579, %v691
      %693 = vdwg.mxu0
      %694 = vst.msk [vmem:[%s280] sm:$0xff] %vm306, %v647
      %695 = vst.msk [vmem:[%s280 + $0x8] sm:$0xff] %vm306, %v650
      %696 = vst.msk [vmem:[%s280 + $0x10] sm:$0xff] %vm306, %v653
      %697 = vst.msk [vmem:[%s280 + $0x18] sm:$0xff] %vm306, %v656
      %698 = vst.msk [vmem:[%s280 + $0x20] sm:$0xff] %vm306, %v659
      %699 = vst.msk [vmem:[%s280 + $0x28] sm:$0xff] %vm306, %v662
      %700 = vst.msk [vmem:[%s280 + $0x30] sm:$0xff] %vm306, %v665
      %701 = vst.msk [vmem:[%s280 + $0x38] sm:$0xff] %vm306, %v668
      %702 = vst.msk [vmem:[%s280 + $0x40] sm:$0xff] %vm306, %v671
      %703 = vst.msk [vmem:[%s280 + $0x48] sm:$0xff] %vm306, %v674
      %704 = vst.msk [vmem:[%s280 + $0x50] sm:$0xff] %vm306, %v677
      %705 = vst.msk [vmem:[%s280 + $0x58] sm:$0xff] %vm306, %v680
      %706 = vst.msk [vmem:[%s280 + $0x60] sm:$0xff] %vm306, %v683
      %707 = vst.msk [vmem:[%s280 + $0x68] sm:$0xff] %vm306, %v686
      %708 = vst.msk [vmem:[%s280 + $0x70] sm:$0xff] %vm306, %v689
      %709 = vst.msk [vmem:[%s280 + $0x78] sm:$0xff] %vm306, %v692
      %s710 = smul.u32 16, %s18
      %p711 = scmp.lt.s32.totalorder %s710, 31
      %s712 = scalar_select %p711, %s710, 31
      %s713 = smul.addr %s712, 8
      %s714 = scalar_lea.vmem %s7, %s713
      // Predicated region
      $region49: #{tpu_custom_call.1} parent=47 // pred_check
        %p715 = pneg %p188
      $region50: #{tpu_custom_call.1} parent=47 // pred_check_branch
        %717 = sbr.rel (%p715) target = $region52
      $region51: #{tpu_custom_call.1} parent=47 // pred_region
        %s718 = smul.u32 16, %s18
      $region52: #{tpu_custom_call.1} parent=47 // pred_fallthru
        _
    $region48: #{tpu_custom_call.1} parent=5 // pred_fallthru
      _
    %p719 = scmp.le.s32.totalorder 2, %s13
    // Predicated region
    $region53: #{tpu_custom_call.1} parent=5 // pred_check
      %p720 = pneg %p719
    $region54: #{tpu_custom_call.1} parent=5 // pred_check_branch
      %722 = sbr.rel (%p720) target = $region56
    $region55: #{tpu_custom_call.1} parent=5 // pred_region
      %s723 = ssub.s32 %s13, 2
      // Predicated region
      $region57: #{tpu_custom_call.1} parent=55 // pred_check
        %p724 = pneg %p194
      $region58: #{tpu_custom_call.1} parent=55 // pred_check_branch
        %726 = sbr.rel (%p724) target = $region60
      $region59: #{tpu_custom_call.1} parent=55 // pred_region
        %s727 = smul.u32 16, %s19
        %p728 = scmp.lt.s32.totalorder %s727, 31
        %s729 = scalar_select %p728, %s727, 31
        %s730 = smul.addr %s729, 8
        %s731 = scalar_lea.vmem %s7, %s730
      $region60: #{tpu_custom_call.1} parent=55 // pred_fallthru
        _
    $region56: #{tpu_custom_call.1} parent=5 // pred_fallthru
      _
  $region6: #{tpu_custom_call.1} parent=0 // loop_footer
    %s17 = sadd.s32 1, %s13
  $region7: #{tpu_custom_call.1} parent=0 // loop_footer_branch
    %12 = sbr.rel target = $region3
  $region8: #{tpu_custom_call.1} parent=0 // loop_exit
    _

</llo_original>
